<compile_context>
chip_gen: v7x
topology: tpu7x:2x2x1
jax: 0.10.0
libtpu: 0.0.40
codegen_flags: <defaults>
</compile_context>

<pallas_src>
import jax
import jax.numpy as jnp
from jax.experimental import pallas as pl
from jax.experimental.pallas import tpu as pltpu

IN_FEATURES = 4096
OUT_FEATURES = 200


def _last_layer_kernel(x_ref, w_ref, b_ref, logits_ref, pred_ref):
    """Single-step kernel (no grid): whole problem lives in VMEM.

    x_ref:      (B, 4096)  f32   (cast to bf16 in-kernel)
    w_ref:      (4096, 200) bf16
    b_ref:      (1, 200)   f32
    logits_ref: (B, 200)   f32
    pred_ref:   (B, 1)     i32
    """
    x_bf16 = x_ref[...].astype(jnp.bfloat16)
    logits = (
        jnp.dot(x_bf16, w_ref[...], preferred_element_type=jnp.float32)
        + b_ref[...]
    )
    logits_ref[...] = logits

    # argmax over the class (lane) dimension; min-index-among-maxima matches
    # jnp.argmax / torch.max first-occurrence tie-break semantics.
    col_ids = jax.lax.broadcasted_iota(jnp.int32, logits.shape, 1)
    max_val = jnp.max(logits, axis=1, keepdims=True)
    is_max = logits == max_val
    pred = jnp.min(
        jnp.where(is_max, col_ids, jnp.int32(OUT_FEATURES)),
        axis=1,
        keepdims=True,
    )
    pred_ref[...] = pred.astype(jnp.int32)


@jax.jit
def last_layer_forward(x, w_t_bf16, b):
    """x: (B, 4096) f32, w_t_bf16: (4096, 200) bf16, b: (1, 200) f32.

    Returns (logits (B, 200) f32, pred (B, 1) i32).
    """
    B = x.shape[0]
    logits, pred = pl.pallas_call(
        _last_layer_kernel,
        out_shape=(
            jax.ShapeDtypeStruct((B, OUT_FEATURES), jnp.float32),
            jax.ShapeDtypeStruct((B, 1), jnp.int32),
        ),
        in_specs=[
            pl.BlockSpec(memory_space=pltpu.MemorySpace.VMEM),  # x (whole)
            pl.BlockSpec(memory_space=pltpu.MemorySpace.VMEM),  # W (whole)
            pl.BlockSpec(memory_space=pltpu.MemorySpace.VMEM),  # bias
        ],
        out_specs=(
            pl.BlockSpec(memory_space=pltpu.MemorySpace.VMEM),  # logits
            pl.BlockSpec(memory_space=pltpu.MemorySpace.VMEM),  # pred
        ),
    )(x, w_t_bf16, b)
    return logits, pred


def make_params(key):
    """Deterministic nn.Linear(4096, 200)-style init (U(-1/sqrt(in), 1/sqrt(in)))."""
    kw, kb = jax.random.split(key)
    bound = 1.0 / (IN_FEATURES ** 0.5)
    w = jax.random.uniform(
        kw, (OUT_FEATURES, IN_FEATURES), jnp.float32, -bound, bound
    )  # PyTorch stores (out, in)
    b = jax.random.uniform(kb, (OUT_FEATURES,), jnp.float32, -bound, bound)

    # Kernel-facing layout: transpose to (in, out), cast to bf16, no padding.
    w_t_bf16 = jnp.transpose(w).astype(jnp.bfloat16)   # (4096, 200) bf16
    b_row = b.reshape(1, OUT_FEATURES)                  # (1, 200) f32
    return w, b, w_t_bf16, b_row


if __name__ == "__main__":
    key = jax.random.PRNGKey(0)
    k_param, k_x = jax.random.split(key)

    w, b, w_t_bf16, b_row = make_params(k_param)

    B = 2
    x = jax.random.normal(k_x, (B, IN_FEATURES), jnp.float32)

    logits, pred = last_layer_forward(x, w_t_bf16, b_row)
    logits = jax.block_until_ready(logits)
    pred = jax.block_until_ready(pred)

    # --- Reference checks (plain JAX, same semantics as the PyTorch forward) ---
    # Reference on bf16-rounded operands (matches kernel precision closely).
    xb = x.astype(jnp.bfloat16).astype(jnp.float32)
    wb = w_t_bf16.astype(jnp.float32)
    ref_logits_bf = (
        jnp.dot(xb, wb, precision=jax.lax.Precision.HIGHEST) + b_row
    )
    assert jnp.allclose(logits, ref_logits_bf, atol=1e-2, rtol=1e-2)

    # In-kernel argmax must agree exactly with argmax over the kernel's logits.
    assert jnp.array_equal(
        pred[:, 0], jnp.argmax(logits, axis=1).astype(jnp.int32)
    )

    # Full-f32 reference argmax: check wherever the top-2 gap comfortably
    # exceeds bf16 rounding noise (avoids flaky near-tie comparisons).
    ref_logits_f32 = (
        jnp.dot(x, w.T, precision=jax.lax.Precision.HIGHEST) + b_row
    )
    ref_pred = jnp.argmax(ref_logits_f32, axis=1).astype(jnp.int32)
    top2 = jax.lax.top_k(ref_logits_f32, 2)[0]
    safe = (top2[:, 0] - top2[:, 1]) > 5e-2
    assert bool(jnp.all(jnp.where(safe, pred[:, 0] == ref_pred, True)))

    # Module's forward returns pred_label.numpy()[0] — a single python int.
    result = int(pred[0, 0])
    assert 0 <= result < OUT_FEATURES

    print("KERNEL_OK")
</pallas_src>

<mosaic_0001>
module attributes {stable_mosaic.version = 11 : i64} {
  func.func @_last_layer_kernel(%arg0: memref<2x4096xf32, #tpu.memory_space<vmem>>, %arg1: memref<4096x200xbf16, #tpu.memory_space<vmem>>, %arg2: memref<1x200xf32, #tpu.memory_space<vmem>>, %arg3: memref<2x200xf32, #tpu.memory_space<vmem>>, %arg4: memref<2x1xi32, #tpu.memory_space<vmem>>) attributes {dimension_semantics = [], scalar_prefetch = 0 : i64, scratch_operands = 0 : i64, tpu.core_type = #tpu.core_type<tc>} {
    %c0 = arith.constant 0 : index
    %c0_0 = arith.constant 0 : index
    %0 = vector.load %arg0[%c0, %c0_0] : memref<2x4096xf32, #tpu.memory_space<vmem>>, vector<2x4096xf32>
    %1 = arith.truncf %0 : vector<2x4096xf32> to vector<2x4096xbf16>
    %c0_1 = arith.constant 0 : index
    %c0_2 = arith.constant 0 : index
    %2 = vector.load %arg1[%c0_1, %c0_2] : memref<4096x200xbf16, #tpu.memory_space<vmem>>, vector<4096x200xbf16>
    %cst = arith.constant dense<0.000000e+00> : vector<2x200xf32>
    %3 = tpu.matmul %1, %2, %cst {dimension_numbers = #tpu.dot_dimension_numbers<[1], [0], [0], [1], [0, 0, 1, 1], [], []>} : vector<2x4096xbf16>, vector<4096x200xbf16>, vector<2x200xf32> -> vector<2x200xf32>
    %c0_3 = arith.constant 0 : index
    %c0_4 = arith.constant 0 : index
    %4 = vector.load %arg2[%c0_3, %c0_4] : memref<1x200xf32, #tpu.memory_space<vmem>>, vector<1x200xf32>
    %5 = vector.broadcast %4 : vector<1x200xf32> to vector<2x200xf32>
    %6 = arith.addf %3, %5 : vector<2x200xf32>
    %c0_5 = arith.constant 0 : index
    %c0_6 = arith.constant 0 : index
    %7 = vector.load %arg3[%c0_5, %c0_6] : memref<2x200xf32, #tpu.memory_space<vmem>>, vector<2x200xf32>
    tpu.vector_store %arg3[%c0_5, %c0_6], %6 {strides = array<i32>} : memref<2x200xf32, #tpu.memory_space<vmem>>, vector<2x200xf32>,
    %8 = tpu.iota {dimensions = array<i32: 1>} : vector<2x200xi32>
    %cst_7 = arith.constant dense<0xFF800000> : vector<2xf32>
    %9 = vector.multi_reduction <maximumf>, %6, %cst_7 [1] : vector<2x200xf32> to vector<2xf32>
    %10 = vector.shape_cast %9 : vector<2xf32> to vector<2x1xf32>
    %11 = vector.broadcast %10 : vector<2x1xf32> to vector<2x200xf32>
    %12 = arith.cmpf oeq, %6, %11 : vector<2x200xf32>
    %c200_i32 = arith.constant 200 : i32
    %13 = vector.broadcast %c200_i32 : i32 to vector<2x200xi32>
    %14 = arith.select %12, %8, %13 : vector<2x200xi1>, vector<2x200xi32>
    %cst_8 = arith.constant dense<2147483647> : vector<2xi32>
    %15 = vector.multi_reduction <minsi>, %14, %cst_8 [1] : vector<2x200xi32> to vector<2xi32>
    %16 = vector.shape_cast %15 : vector<2xi32> to vector<2x1xi32>
    %c0_9 = arith.constant 0 : index
    %c0_10 = arith.constant 0 : index
    %17 = vector.load %arg4[%c0_9, %c0_10] : memref<2x1xi32, #tpu.memory_space<vmem>>, vector<2x1xi32>
    tpu.vector_store %arg4[%c0_9, %c0_10], %16 {strides = array<i32>} : memref<2x1xi32, #tpu.memory_space<vmem>>, vector<2x1xi32>,
    return
  }
}

</mosaic_0001>

<llo_original>
// kernel: last_layer_forward.1
$region0: #{last_layer_forward.1}
  #allocation0 [shape = 'u32[]', space=smem, size = 0x4, offset = 0x4, fixed_abs, tag = 'smem constant byte address 0x4 - core index']
  #allocation1 [shape = 'u32[144,128]{1,0:T(1,128)}', space=vmem, size = 0x12000, scoped, tag = 'internal scratch']
  %s0 = inlined_call_operand.vmem [shape: f32[2,4096], index: 0, kind: input, shape index: {}]
  %s1 = inlined_call_operand.vmem [shape: bf16[4096,200], index: 1, kind: input, shape index: {}]
  %s2 = inlined_call_operand.vmem [shape: f32[1,200], index: 2, kind: input, shape index: {}]
  %s3 = inlined_call_operand.hbm [shape: f32[2,200], index: 3, kind: output, shape index: {0}]
  %s4 = inlined_call_operand.vmem [shape: s32[2,1], index: 4, kind: output, shape index: {1}]
  %5 = xla_tuple %s3, %s4
  %s6 = sld [smem:[#allocation0]]
  $region30: #{last_layer_forward.1} parent=0
    _
  %s8 = ssub.s32 1, %s6
  %s9 = scalar_select 0, %s8, %s6
  $region1: #{last_layer_forward.1} parent=0
    #allocation2 [shape = 'u8[2048]{0}', space=vmem, size = 0x800, scoped, tag = 'output window, operand 0, single buffered']
    #allocation3 [shape = 's32[1]{0}', space=sflag, size = 0x4, scoped, tag = 'scoped memory for last_layer_forward.1']
    %10 = vsyncpa [#allocation3], 0
    // Predicated region
    $region2: #{last_layer_forward.1} parent=1 // pred_check
      _
    $region3: #{last_layer_forward.1} parent=1 // pred_check_branch
      %12 = sbr.rel (0) target = $region5
    $region4: #{last_layer_forward.1} parent=1 // pred_region
      _
    $region5: #{last_layer_forward.1} parent=1 // pred_fallthru
      _
    // Predicated region
    $region6: #{last_layer_forward.1} parent=1 // pred_check
      _
    $region7: #{last_layer_forward.1} parent=1 // pred_check_branch
      %14 = sbr.rel (0) target = $region9
    $region8: #{last_layer_forward.1} parent=1 // pred_region
      _
    $region9: #{last_layer_forward.1} parent=1 // pred_fallthru
      _
    // Predicated region
    $region10: #{last_layer_forward.1} parent=1 // pred_check
      _
    $region11: #{last_layer_forward.1} parent=1 // pred_check_branch
      %16 = sbr.rel (0) target = $region13
    $region12: #{last_layer_forward.1} parent=1 // pred_region
      _
    $region13: #{last_layer_forward.1} parent=1 // pred_fallthru
      _
    %v17 = vld [vmem:[%s0] sm:$0xff]
    %v18 = vld [vmem:[%s0 + $0x8] sm:$0xff]
    %v19 = vld [vmem:[%s0 + $0x10] sm:$0xff]
    %v20 = vld [vmem:[%s0 + $0x18] sm:$0xff]
    %v21 = vld [vmem:[%s0 + $0x20] sm:$0xff]
    %v22 = vld [vmem:[%s0 + $0x28] sm:$0xff]
    %v23 = vld [vmem:[%s0 + $0x30] sm:$0xff]
    %v24 = vld [vmem:[%s0 + $0x38] sm:$0xff]
    %v33 = vcombine.high %v17, %v17
    %v35 = vunpack.c.l.s4 1983009808
    %v36 = vunpack.c.0.s8 %v35
    %v37 = vlaneseq
    %v38 = vshrl.u32 %v37, 7
    %v39 = vsub.s32 %v36, %v38
    %v40 = vrot.slane %v17, %v39
    %v42 = vunpack.c.l.s4 1983009808
    %v43 = vunpack.c.0.s8 %v42
    %v44 = vlaneseq
    %v45 = vshrl.u32 %v44, 7
    %v46 = vsub.s32 %v43, %v45
    %v47 = vrot.slane %v33, %v46
    %v48 = vcombine.high %v40, %v40
    %v49 = vcombine.high %v47, %v47
    %v50 = vcombine.high %v18, %v18
    %v52 = vunpack.c.l.s4 1983009808
    %v53 = vunpack.c.0.s8 %v52
    %v54 = vlaneseq
    %v55 = vshrl.u32 %v54, 7
    %v56 = vsub.s32 %v53, %v55
    %v57 = vrot.slane %v18, %v56
    %v59 = vunpack.c.l.s4 1983009808
    %v60 = vunpack.c.0.s8 %v59
    %v61 = vlaneseq
    %v62 = vshrl.u32 %v61, 7
    %v63 = vsub.s32 %v60, %v62
    %v64 = vrot.slane %v50, %v63
    %v65 = vcombine.high %v57, %v57
    %v66 = vcombine.high %v64, %v64
    %v67 = vcombine.high %v19, %v19
    %v69 = vunpack.c.l.s4 1983009808
    %v70 = vunpack.c.0.s8 %v69
    %v71 = vlaneseq
    %v72 = vshrl.u32 %v71, 7
    %v73 = vsub.s32 %v70, %v72
    %v74 = vrot.slane %v19, %v73
    %v76 = vunpack.c.l.s4 1983009808
    %v77 = vunpack.c.0.s8 %v76
    %v78 = vlaneseq
    %v79 = vshrl.u32 %v78, 7
    %v80 = vsub.s32 %v77, %v79
    %v81 = vrot.slane %v67, %v80
    %v82 = vcombine.high %v74, %v74
    %v83 = vcombine.high %v81, %v81
    %v84 = vcombine.high %v20, %v20
    %v86 = vunpack.c.l.s4 1983009808
    %v87 = vunpack.c.0.s8 %v86
    %v88 = vlaneseq
    %v89 = vshrl.u32 %v88, 7
    %v90 = vsub.s32 %v87, %v89
    %v91 = vrot.slane %v20, %v90
    %v93 = vunpack.c.l.s4 1983009808
    %v94 = vunpack.c.0.s8 %v93
    %v95 = vlaneseq
    %v96 = vshrl.u32 %v95, 7
    %v97 = vsub.s32 %v94, %v96
    %v98 = vrot.slane %v84, %v97
    %v99 = vcombine.high %v91, %v91
    %v100 = vcombine.high %v98, %v98
    %v101 = vcombine.high %v21, %v21
    %v103 = vunpack.c.l.s4 1983009808
    %v104 = vunpack.c.0.s8 %v103
    %v105 = vlaneseq
    %v106 = vshrl.u32 %v105, 7
    %v107 = vsub.s32 %v104, %v106
    %v108 = vrot.slane %v21, %v107
    %v110 = vunpack.c.l.s4 1983009808
    %v111 = vunpack.c.0.s8 %v110
    %v112 = vlaneseq
    %v113 = vshrl.u32 %v112, 7
    %v114 = vsub.s32 %v111, %v113
    %v115 = vrot.slane %v101, %v114
    %v116 = vcombine.high %v108, %v108
    %v117 = vcombine.high %v115, %v115
    %v118 = vcombine.high %v22, %v22
    %v120 = vunpack.c.l.s4 1983009808
    %v121 = vunpack.c.0.s8 %v120
    %v122 = vlaneseq
    %v123 = vshrl.u32 %v122, 7
    %v124 = vsub.s32 %v121, %v123
    %v125 = vrot.slane %v22, %v124
    %v127 = vunpack.c.l.s4 1983009808
    %v128 = vunpack.c.0.s8 %v127
    %v129 = vlaneseq
    %v130 = vshrl.u32 %v129, 7
    %v131 = vsub.s32 %v128, %v130
    %v132 = vrot.slane %v118, %v131
    %v133 = vcombine.high %v125, %v125
    %v134 = vcombine.high %v132, %v132
    %v135 = vcombine.high %v23, %v23
    %v137 = vunpack.c.l.s4 1983009808
    %v138 = vunpack.c.0.s8 %v137
    %v139 = vlaneseq
    %v140 = vshrl.u32 %v139, 7
    %v141 = vsub.s32 %v138, %v140
    %v142 = vrot.slane %v23, %v141
    %v144 = vunpack.c.l.s4 1983009808
    %v145 = vunpack.c.0.s8 %v144
    %v146 = vlaneseq
    %v147 = vshrl.u32 %v146, 7
    %v148 = vsub.s32 %v145, %v147
    %v149 = vrot.slane %v135, %v148
    %v150 = vcombine.high %v142, %v142
    %v151 = vcombine.high %v149, %v149
    %v152 = vcombine.high %v24, %v24
    %v154 = vunpack.c.l.s4 1983009808
    %v155 = vunpack.c.0.s8 %v154
    %v156 = vlaneseq
    %v157 = vshrl.u32 %v156, 7
    %v158 = vsub.s32 %v155, %v157
    %v159 = vrot.slane %v24, %v158
    %v161 = vunpack.c.l.s4 1983009808
    %v162 = vunpack.c.0.s8 %v161
    %v163 = vlaneseq
    %v164 = vshrl.u32 %v163, 7
    %v165 = vsub.s32 %v162, %v164
    %v166 = vrot.slane %v152, %v165
    %v167 = vcombine.high %v159, %v159
    %v168 = vcombine.high %v166, %v166
    %v201 = vpack.c.bf16 %v40, %v40
    %v202 = vpack.c.bf16 %v48, %v48
    %v203 = vpack.c.bf16 %v47, %v47
    %v204 = vpack.c.bf16 %v49, %v49
    %v205 = vpack.c.bf16 %v57, %v57
    %v206 = vpack.c.bf16 %v65, %v65
    %v207 = vpack.c.bf16 %v64, %v64
    %v208 = vpack.c.bf16 %v66, %v66
    %v209 = vpack.c.bf16 %v74, %v74
    %v210 = vpack.c.bf16 %v82, %v82
    %v211 = vpack.c.bf16 %v81, %v81
    %v212 = vpack.c.bf16 %v83, %v83
    %v213 = vpack.c.bf16 %v91, %v91
    %v214 = vpack.c.bf16 %v99, %v99
    %v215 = vpack.c.bf16 %v98, %v98
    %v216 = vpack.c.bf16 %v100, %v100
    %v217 = vpack.c.bf16 %v108, %v108
    %v218 = vpack.c.bf16 %v116, %v116
    %v219 = vpack.c.bf16 %v115, %v115
    %v220 = vpack.c.bf16 %v117, %v117
    %v221 = vpack.c.bf16 %v125, %v125
    %v222 = vpack.c.bf16 %v133, %v133
    %v223 = vpack.c.bf16 %v132, %v132
    %v224 = vpack.c.bf16 %v134, %v134
    %v225 = vpack.c.bf16 %v142, %v142
    %v226 = vpack.c.bf16 %v150, %v150
    %v227 = vpack.c.bf16 %v149, %v149
    %v228 = vpack.c.bf16 %v151, %v151
    %v229 = vpack.c.bf16 %v159, %v159
    %v230 = vpack.c.bf16 %v167, %v167
    %v231 = vpack.c.bf16 %v166, %v166
    %v232 = vpack.c.bf16 %v168, %v168
    %v233 = vld [vmem:[%s1] sm:$0xff]
    %v234 = vld [vmem:[%s1 + $0x8] sm:$0xff]
    %v235 = vld [vmem:[%s1 + $0x10] sm:$0xff]
    %v236 = vld [vmem:[%s1 + $0x18] sm:$0xff]
    %v237 = vld [vmem:[%s1 + $0x20] sm:$0xff]
    %v238 = vld [vmem:[%s1 + $0x28] sm:$0xff]
    %v239 = vld [vmem:[%s1 + $0x30] sm:$0xff]
    %v240 = vld [vmem:[%s1 + $0x38] sm:$0xff]
    %v241 = vld [vmem:[%s1 + $0x40] sm:$0xff]
    %v242 = vld [vmem:[%s1 + $0x48] sm:$0xff]
    %v243 = vld [vmem:[%s1 + $0x50] sm:$0xff]
    %v244 = vld [vmem:[%s1 + $0x58] sm:$0xff]
    %v245 = vld [vmem:[%s1 + $0x60] sm:$0xff]
    %v246 = vld [vmem:[%s1 + $0x68] sm:$0xff]
    %v247 = vld [vmem:[%s1 + $0x70] sm:$0xff]
    %v248 = vld [vmem:[%s1 + $0x78] sm:$0xff]
    %v249 = vld [vmem:[%s1 + $0x80] sm:$0xff]
    %v250 = vld [vmem:[%s1 + $0x88] sm:$0xff]
    %v251 = vld [vmem:[%s1 + $0x90] sm:$0xff]
    %v252 = vld [vmem:[%s1 + $0x98] sm:$0xff]
    %v253 = vld [vmem:[%s1 + $0xa0] sm:$0xff]
    %v254 = vld [vmem:[%s1 + $0xa8] sm:$0xff]
    %v255 = vld [vmem:[%s1 + $0xb0] sm:$0xff]
    %v256 = vld [vmem:[%s1 + $0xb8] sm:$0xff]
    %v257 = vld [vmem:[%s1 + $0xc0] sm:$0xff]
    %v258 = vld [vmem:[%s1 + $0xc8] sm:$0xff]
    %v259 = vld [vmem:[%s1 + $0xd0] sm:$0xff]
    %v260 = vld [vmem:[%s1 + $0xd8] sm:$0xff]
    %v261 = vld [vmem:[%s1 + $0xe0] sm:$0xff]
    %v262 = vld [vmem:[%s1 + $0xe8] sm:$0xff]
    %v263 = vld [vmem:[%s1 + $0xf0] sm:$0xff]
    %v264 = vld [vmem:[%s1 + $0xf8] sm:$0xff]
    %v265 = vld [vmem:[%s1 + $0x100] sm:$0xff]
    %v266 = vld [vmem:[%s1 + $0x108] sm:$0xff]
    %v267 = vld [vmem:[%s1 + $0x110] sm:$0xff]
    %v268 = vld [vmem:[%s1 + $0x118] sm:$0xff]
    %v269 = vld [vmem:[%s1 + $0x120] sm:$0xff]
    %v270 = vld [vmem:[%s1 + $0x128] sm:$0xff]
    %v271 = vld [vmem:[%s1 + $0x130] sm:$0xff]
    %v272 = vld [vmem:[%s1 + $0x138] sm:$0xff]
    %v273 = vld [vmem:[%s1 + $0x140] sm:$0xff]
    %v274 = vld [vmem:[%s1 + $0x148] sm:$0xff]
    %v275 = vld [vmem:[%s1 + $0x150] sm:$0xff]
    %v276 = vld [vmem:[%s1 + $0x158] sm:$0xff]
    %v277 = vld [vmem:[%s1 + $0x160] sm:$0xff]
    %v278 = vld [vmem:[%s1 + $0x168] sm:$0xff]
    %v279 = vld [vmem:[%s1 + $0x170] sm:$0xff]
    %v280 = vld [vmem:[%s1 + $0x178] sm:$0xff]
    %v281 = vld [vmem:[%s1 + $0x180] sm:$0xff]
    %v282 = vld [vmem:[%s1 + $0x188] sm:$0xff]
    %v283 = vld [vmem:[%s1 + $0x190] sm:$0xff]
    %v284 = vld [vmem:[%s1 + $0x198] sm:$0xff]
    %v285 = vld [vmem:[%s1 + $0x1a0] sm:$0xff]
    %v286 = vld [vmem:[%s1 + $0x1a8] sm:$0xff]
    %v287 = vld [vmem:[%s1 + $0x1b0] sm:$0xff]
    %v288 = vld [vmem:[%s1 + $0x1b8] sm:$0xff]
    %v289 = vld [vmem:[%s1 + $0x1c0] sm:$0xff]
    %v290 = vld [vmem:[%s1 + $0x1c8] sm:$0xff]
    %v291 = vld [vmem:[%s1 + $0x1d0] sm:$0xff]
    %v292 = vld [vmem:[%s1 + $0x1d8] sm:$0xff]
    %v293 = vld [vmem:[%s1 + $0x1e0] sm:$0xff]
    %v294 = vld [vmem:[%s1 + $0x1e8] sm:$0xff]
    %v295 = vld [vmem:[%s1 + $0x1f0] sm:$0xff]
    %v296 = vld [vmem:[%s1 + $0x1f8] sm:$0xff]
    %v297 = vld [vmem:[%s1 + $0x200] sm:$0xff]
    %v298 = vld [vmem:[%s1 + $0x208] sm:$0xff]
    %v299 = vld [vmem:[%s1 + $0x210] sm:$0xff]
    %v300 = vld [vmem:[%s1 + $0x218] sm:$0xff]
    %v301 = vld [vmem:[%s1 + $0x220] sm:$0xff]
    %v302 = vld [vmem:[%s1 + $0x228] sm:$0xff]
    %v303 = vld [vmem:[%s1 + $0x230] sm:$0xff]
    %v304 = vld [vmem:[%s1 + $0x238] sm:$0xff]
    %v305 = vld [vmem:[%s1 + $0x240] sm:$0xff]
    %v306 = vld [vmem:[%s1 + $0x248] sm:$0xff]
    %v307 = vld [vmem:[%s1 + $0x250] sm:$0xff]
    %v308 = vld [vmem:[%s1 + $0x258] sm:$0xff]
    %v309 = vld [vmem:[%s1 + $0x260] sm:$0xff]
    %v310 = vld [vmem:[%s1 + $0x268] sm:$0xff]
    %v311 = vld [vmem:[%s1 + $0x270] sm:$0xff]
    %v312 = vld [vmem:[%s1 + $0x278] sm:$0xff]
    %v313 = vld [vmem:[%s1 + $0x280] sm:$0xff]
    %v314 = vld [vmem:[%s1 + $0x288] sm:$0xff]
    %v315 = vld [vmem:[%s1 + $0x290] sm:$0xff]
    %v316 = vld [vmem:[%s1 + $0x298] sm:$0xff]
    %v317 = vld [vmem:[%s1 + $0x2a0] sm:$0xff]
    %v318 = vld [vmem:[%s1 + $0x2a8] sm:$0xff]
    %v319 = vld [vmem:[%s1 + $0x2b0] sm:$0xff]
    %v320 = vld [vmem:[%s1 + $0x2b8] sm:$0xff]
    %v321 = vld [vmem:[%s1 + $0x2c0] sm:$0xff]
    %v322 = vld [vmem:[%s1 + $0x2c8] sm:$0xff]
    %v323 = vld [vmem:[%s1 + $0x2d0] sm:$0xff]
    %v324 = vld [vmem:[%s1 + $0x2d8] sm:$0xff]
    %v325 = vld [vmem:[%s1 + $0x2e0] sm:$0xff]
    %v326 = vld [vmem:[%s1 + $0x2e8] sm:$0xff]
    %v327 = vld [vmem:[%s1 + $0x2f0] sm:$0xff]
    %v328 = vld [vmem:[%s1 + $0x2f8] sm:$0xff]
    %v329 = vld [vmem:[%s1 + $0x300] sm:$0xff]
    %v330 = vld [vmem:[%s1 + $0x308] sm:$0xff]
    %v331 = vld [vmem:[%s1 + $0x310] sm:$0xff]
    %v332 = vld [vmem:[%s1 + $0x318] sm:$0xff]
    %v333 = vld [vmem:[%s1 + $0x320] sm:$0xff]
    %v334 = vld [vmem:[%s1 + $0x328] sm:$0xff]
    %v335 = vld [vmem:[%s1 + $0x330] sm:$0xff]
    %v336 = vld [vmem:[%s1 + $0x338] sm:$0xff]
    %v337 = vld [vmem:[%s1 + $0x340] sm:$0xff]
    %v338 = vld [vmem:[%s1 + $0x348] sm:$0xff]
    %v339 = vld [vmem:[%s1 + $0x350] sm:$0xff]
    %v340 = vld [vmem:[%s1 + $0x358] sm:$0xff]
    %v341 = vld [vmem:[%s1 + $0x360] sm:$0xff]
    %v342 = vld [vmem:[%s1 + $0x368] sm:$0xff]
    %v343 = vld [vmem:[%s1 + $0x370] sm:$0xff]
    %v344 = vld [vmem:[%s1 + $0x378] sm:$0xff]
    %v345 = vld [vmem:[%s1 + $0x380] sm:$0xff]
    %v346 = vld [vmem:[%s1 + $0x388] sm:$0xff]
    %v347 = vld [vmem:[%s1 + $0x390] sm:$0xff]
    %v348 = vld [vmem:[%s1 + $0x398] sm:$0xff]
    %v349 = vld [vmem:[%s1 + $0x3a0] sm:$0xff]
    %v350 = vld [vmem:[%s1 + $0x3a8] sm:$0xff]
    %v351 = vld [vmem:[%s1 + $0x3b0] sm:$0xff]
    %v352 = vld [vmem:[%s1 + $0x3b8] sm:$0xff]
    %v353 = vld [vmem:[%s1 + $0x3c0] sm:$0xff]
    %v354 = vld [vmem:[%s1 + $0x3c8] sm:$0xff]
    %v355 = vld [vmem:[%s1 + $0x3d0] sm:$0xff]
    %v356 = vld [vmem:[%s1 + $0x3d8] sm:$0xff]
    %v357 = vld [vmem:[%s1 + $0x3e0] sm:$0xff]
    %v358 = vld [vmem:[%s1 + $0x3e8] sm:$0xff]
    %v359 = vld [vmem:[%s1 + $0x3f0] sm:$0xff]
    %v360 = vld [vmem:[%s1 + $0x3f8] sm:$0xff]
    %v361 = vld [vmem:[%s1 + $0x400] sm:$0xff]
    %v362 = vld [vmem:[%s1 + $0x408] sm:$0xff]
    %v363 = vld [vmem:[%s1 + $0x410] sm:$0xff]
    %v364 = vld [vmem:[%s1 + $0x418] sm:$0xff]
    %v365 = vld [vmem:[%s1 + $0x420] sm:$0xff]
    %v366 = vld [vmem:[%s1 + $0x428] sm:$0xff]
    %v367 = vld [vmem:[%s1 + $0x430] sm:$0xff]
    %v368 = vld [vmem:[%s1 + $0x438] sm:$0xff]
    %v369 = vld [vmem:[%s1 + $0x440] sm:$0xff]
    %v370 = vld [vmem:[%s1 + $0x448] sm:$0xff]
    %v371 = vld [vmem:[%s1 + $0x450] sm:$0xff]
    %v372 = vld [vmem:[%s1 + $0x458] sm:$0xff]
    %v373 = vld [vmem:[%s1 + $0x460] sm:$0xff]
    %v374 = vld [vmem:[%s1 + $0x468] sm:$0xff]
    %v375 = vld [vmem:[%s1 + $0x470] sm:$0xff]
    %v376 = vld [vmem:[%s1 + $0x478] sm:$0xff]
    %v377 = vld [vmem:[%s1 + $0x480] sm:$0xff]
    %v378 = vld [vmem:[%s1 + $0x488] sm:$0xff]
    %v379 = vld [vmem:[%s1 + $0x490] sm:$0xff]
    %v380 = vld [vmem:[%s1 + $0x498] sm:$0xff]
    %v381 = vld [vmem:[%s1 + $0x4a0] sm:$0xff]
    %v382 = vld [vmem:[%s1 + $0x4a8] sm:$0xff]
    %v383 = vld [vmem:[%s1 + $0x4b0] sm:$0xff]
    %v384 = vld [vmem:[%s1 + $0x4b8] sm:$0xff]
    %v385 = vld [vmem:[%s1 + $0x4c0] sm:$0xff]
    %v386 = vld [vmem:[%s1 + $0x4c8] sm:$0xff]
    %v387 = vld [vmem:[%s1 + $0x4d0] sm:$0xff]
    %v388 = vld [vmem:[%s1 + $0x4d8] sm:$0xff]
    %v389 = vld [vmem:[%s1 + $0x4e0] sm:$0xff]
    %v390 = vld [vmem:[%s1 + $0x4e8] sm:$0xff]
    %v391 = vld [vmem:[%s1 + $0x4f0] sm:$0xff]
    %v392 = vld [vmem:[%s1 + $0x4f8] sm:$0xff]
    %v393 = vld [vmem:[%s1 + $0x500] sm:$0xff]
    %v394 = vld [vmem:[%s1 + $0x508] sm:$0xff]
    %v395 = vld [vmem:[%s1 + $0x510] sm:$0xff]
    %v396 = vld [vmem:[%s1 + $0x518] sm:$0xff]
    %v397 = vld [vmem:[%s1 + $0x520] sm:$0xff]
    %v398 = vld [vmem:[%s1 + $0x528] sm:$0xff]
    %v399 = vld [vmem:[%s1 + $0x530] sm:$0xff]
    %v400 = vld [vmem:[%s1 + $0x538] sm:$0xff]
    %v401 = vld [vmem:[%s1 + $0x540] sm:$0xff]
    %v402 = vld [vmem:[%s1 + $0x548] sm:$0xff]
    %v403 = vld [vmem:[%s1 + $0x550] sm:$0xff]
    %v404 = vld [vmem:[%s1 + $0x558] sm:$0xff]
    %v405 = vld [vmem:[%s1 + $0x560] sm:$0xff]
    %v406 = vld [vmem:[%s1 + $0x568] sm:$0xff]
    %v407 = vld [vmem:[%s1 + $0x570] sm:$0xff]
    %v408 = vld [vmem:[%s1 + $0x578] sm:$0xff]
    %v409 = vld [vmem:[%s1 + $0x580] sm:$0xff]
    %v410 = vld [vmem:[%s1 + $0x588] sm:$0xff]
    %v411 = vld [vmem:[%s1 + $0x590] sm:$0xff]
    %v412 = vld [vmem:[%s1 + $0x598] sm:$0xff]
    %v413 = vld [vmem:[%s1 + $0x5a0] sm:$0xff]
    %v414 = vld [vmem:[%s1 + $0x5a8] sm:$0xff]
    %v415 = vld [vmem:[%s1 + $0x5b0] sm:$0xff]
    %v416 = vld [vmem:[%s1 + $0x5b8] sm:$0xff]
    %v417 = vld [vmem:[%s1 + $0x5c0] sm:$0xff]
    %v418 = vld [vmem:[%s1 + $0x5c8] sm:$0xff]
    %v419 = vld [vmem:[%s1 + $0x5d0] sm:$0xff]
    %v420 = vld [vmem:[%s1 + $0x5d8] sm:$0xff]
    %v421 = vld [vmem:[%s1 + $0x5e0] sm:$0xff]
    %v422 = vld [vmem:[%s1 + $0x5e8] sm:$0xff]
    %v423 = vld [vmem:[%s1 + $0x5f0] sm:$0xff]
    %v424 = vld [vmem:[%s1 + $0x5f8] sm:$0xff]
    %v425 = vld [vmem:[%s1 + $0x600] sm:$0xff]
    %v426 = vld [vmem:[%s1 + $0x608] sm:$0xff]
    %v427 = vld [vmem:[%s1 + $0x610] sm:$0xff]
    %v428 = vld [vmem:[%s1 + $0x618] sm:$0xff]
    %v429 = vld [vmem:[%s1 + $0x620] sm:$0xff]
    %v430 = vld [vmem:[%s1 + $0x628] sm:$0xff]
    %v431 = vld [vmem:[%s1 + $0x630] sm:$0xff]
    %v432 = vld [vmem:[%s1 + $0x638] sm:$0xff]
    %v433 = vld [vmem:[%s1 + $0x640] sm:$0xff]
    %v434 = vld [vmem:[%s1 + $0x648] sm:$0xff]
    %v435 = vld [vmem:[%s1 + $0x650] sm:$0xff]
    %v436 = vld [vmem:[%s1 + $0x658] sm:$0xff]
    %v437 = vld [vmem:[%s1 + $0x660] sm:$0xff]
    %v438 = vld [vmem:[%s1 + $0x668] sm:$0xff]
    %v439 = vld [vmem:[%s1 + $0x670] sm:$0xff]
    %v440 = vld [vmem:[%s1 + $0x678] sm:$0xff]
    %v441 = vld [vmem:[%s1 + $0x680] sm:$0xff]
    %v442 = vld [vmem:[%s1 + $0x688] sm:$0xff]
    %v443 = vld [vmem:[%s1 + $0x690] sm:$0xff]
    %v444 = vld [vmem:[%s1 + $0x698] sm:$0xff]
    %v445 = vld [vmem:[%s1 + $0x6a0] sm:$0xff]
    %v446 = vld [vmem:[%s1 + $0x6a8] sm:$0xff]
    %v447 = vld [vmem:[%s1 + $0x6b0] sm:$0xff]
    %v448 = vld [vmem:[%s1 + $0x6b8] sm:$0xff]
    %v449 = vld [vmem:[%s1 + $0x6c0] sm:$0xff]
    %v450 = vld [vmem:[%s1 + $0x6c8] sm:$0xff]
    %v451 = vld [vmem:[%s1 + $0x6d0] sm:$0xff]
    %v452 = vld [vmem:[%s1 + $0x6d8] sm:$0xff]
    %v453 = vld [vmem:[%s1 + $0x6e0] sm:$0xff]
    %v454 = vld [vmem:[%s1 + $0x6e8] sm:$0xff]
    %v455 = vld [vmem:[%s1 + $0x6f0] sm:$0xff]
    %v456 = vld [vmem:[%s1 + $0x6f8] sm:$0xff]
    %v457 = vld [vmem:[%s1 + $0x700] sm:$0xff]
    %v458 = vld [vmem:[%s1 + $0x708] sm:$0xff]
    %v459 = vld [vmem:[%s1 + $0x710] sm:$0xff]
    %v460 = vld [vmem:[%s1 + $0x718] sm:$0xff]
    %v461 = vld [vmem:[%s1 + $0x720] sm:$0xff]
    %v462 = vld [vmem:[%s1 + $0x728] sm:$0xff]
    %v463 = vld [vmem:[%s1 + $0x730] sm:$0xff]
    %v464 = vld [vmem:[%s1 + $0x738] sm:$0xff]
    %v465 = vld [vmem:[%s1 + $0x740] sm:$0xff]
    %v466 = vld [vmem:[%s1 + $0x748] sm:$0xff]
    %v467 = vld [vmem:[%s1 + $0x750] sm:$0xff]
    %v468 = vld [vmem:[%s1 + $0x758] sm:$0xff]
    %v469 = vld [vmem:[%s1 + $0x760] sm:$0xff]
    %v470 = vld [vmem:[%s1 + $0x768] sm:$0xff]
    %v471 = vld [vmem:[%s1 + $0x770] sm:$0xff]
    %v472 = vld [vmem:[%s1 + $0x778] sm:$0xff]
    %v473 = vld [vmem:[%s1 + $0x780] sm:$0xff]
    %v474 = vld [vmem:[%s1 + $0x788] sm:$0xff]
    %v475 = vld [vmem:[%s1 + $0x790] sm:$0xff]
    %v476 = vld [vmem:[%s1 + $0x798] sm:$0xff]
    %v477 = vld [vmem:[%s1 + $0x7a0] sm:$0xff]
    %v478 = vld [vmem:[%s1 + $0x7a8] sm:$0xff]
    %v479 = vld [vmem:[%s1 + $0x7b0] sm:$0xff]
    %v480 = vld [vmem:[%s1 + $0x7b8] sm:$0xff]
    %v481 = vld [vmem:[%s1 + $0x7c0] sm:$0xff]
    %v482 = vld [vmem:[%s1 + $0x7c8] sm:$0xff]
    %v483 = vld [vmem:[%s1 + $0x7d0] sm:$0xff]
    %v484 = vld [vmem:[%s1 + $0x7d8] sm:$0xff]
    %v485 = vld [vmem:[%s1 + $0x7e0] sm:$0xff]
    %v486 = vld [vmem:[%s1 + $0x7e8] sm:$0xff]
    %v487 = vld [vmem:[%s1 + $0x7f0] sm:$0xff]
    %v488 = vld [vmem:[%s1 + $0x7f8] sm:$0xff]
    %v489 = vld [vmem:[%s1 + $0x800] sm:$0xff]
    %v490 = vld [vmem:[%s1 + $0x808] sm:$0xff]
    %v491 = vld [vmem:[%s1 + $0x810] sm:$0xff]
    %v492 = vld [vmem:[%s1 + $0x818] sm:$0xff]
    %v493 = vld [vmem:[%s1 + $0x820] sm:$0xff]
    %v494 = vld [vmem:[%s1 + $0x828] sm:$0xff]
    %v495 = vld [vmem:[%s1 + $0x830] sm:$0xff]
    %v496 = vld [vmem:[%s1 + $0x838] sm:$0xff]
    %v497 = vld [vmem:[%s1 + $0x840] sm:$0xff]
    %v498 = vld [vmem:[%s1 + $0x848] sm:$0xff]
    %v499 = vld [vmem:[%s1 + $0x850] sm:$0xff]
    %v500 = vld [vmem:[%s1 + $0x858] sm:$0xff]
    %v501 = vld [vmem:[%s1 + $0x860] sm:$0xff]
    %v502 = vld [vmem:[%s1 + $0x868] sm:$0xff]
    %v503 = vld [vmem:[%s1 + $0x870] sm:$0xff]
    %v504 = vld [vmem:[%s1 + $0x878] sm:$0xff]
    %v505 = vld [vmem:[%s1 + $0x880] sm:$0xff]
    %v506 = vld [vmem:[%s1 + $0x888] sm:$0xff]
    %v507 = vld [vmem:[%s1 + $0x890] sm:$0xff]
    %v508 = vld [vmem:[%s1 + $0x898] sm:$0xff]
    %v509 = vld [vmem:[%s1 + $0x8a0] sm:$0xff]
    %v510 = vld [vmem:[%s1 + $0x8a8] sm:$0xff]
    %v511 = vld [vmem:[%s1 + $0x8b0] sm:$0xff]
    %v512 = vld [vmem:[%s1 + $0x8b8] sm:$0xff]
    %v513 = vld [vmem:[%s1 + $0x8c0] sm:$0xff]
    %v514 = vld [vmem:[%s1 + $0x8c8] sm:$0xff]
    %v515 = vld [vmem:[%s1 + $0x8d0] sm:$0xff]
    %v516 = vld [vmem:[%s1 + $0x8d8] sm:$0xff]
    %v517 = vld [vmem:[%s1 + $0x8e0] sm:$0xff]
    %v518 = vld [vmem:[%s1 + $0x8e8] sm:$0xff]
    %v519 = vld [vmem:[%s1 + $0x8f0] sm:$0xff]
    %v520 = vld [vmem:[%s1 + $0x8f8] sm:$0xff]
    %v521 = vld [vmem:[%s1 + $0x900] sm:$0xff]
    %v522 = vld [vmem:[%s1 + $0x908] sm:$0xff]
    %v523 = vld [vmem:[%s1 + $0x910] sm:$0xff]
    %v524 = vld [vmem:[%s1 + $0x918] sm:$0xff]
    %v525 = vld [vmem:[%s1 + $0x920] sm:$0xff]
    %v526 = vld [vmem:[%s1 + $0x928] sm:$0xff]
    %v527 = vld [vmem:[%s1 + $0x930] sm:$0xff]
    %v528 = vld [vmem:[%s1 + $0x938] sm:$0xff]
    %v529 = vld [vmem:[%s1 + $0x940] sm:$0xff]
    %v530 = vld [vmem:[%s1 + $0x948] sm:$0xff]
    %v531 = vld [vmem:[%s1 + $0x950] sm:$0xff]
    %v532 = vld [vmem:[%s1 + $0x958] sm:$0xff]
    %v533 = vld [vmem:[%s1 + $0x960] sm:$0xff]
    %v534 = vld [vmem:[%s1 + $0x968] sm:$0xff]
    %v535 = vld [vmem:[%s1 + $0x970] sm:$0xff]
    %v536 = vld [vmem:[%s1 + $0x978] sm:$0xff]
    %v537 = vld [vmem:[%s1 + $0x980] sm:$0xff]
    %v538 = vld [vmem:[%s1 + $0x988] sm:$0xff]
    %v539 = vld [vmem:[%s1 + $0x990] sm:$0xff]
    %v540 = vld [vmem:[%s1 + $0x998] sm:$0xff]
    %v541 = vld [vmem:[%s1 + $0x9a0] sm:$0xff]
    %v542 = vld [vmem:[%s1 + $0x9a8] sm:$0xff]
    %v543 = vld [vmem:[%s1 + $0x9b0] sm:$0xff]
    %v544 = vld [vmem:[%s1 + $0x9b8] sm:$0xff]
    %v545 = vld [vmem:[%s1 + $0x9c0] sm:$0xff]
    %v546 = vld [vmem:[%s1 + $0x9c8] sm:$0xff]
    %v547 = vld [vmem:[%s1 + $0x9d0] sm:$0xff]
    %v548 = vld [vmem:[%s1 + $0x9d8] sm:$0xff]
    %v549 = vld [vmem:[%s1 + $0x9e0] sm:$0xff]
    %v550 = vld [vmem:[%s1 + $0x9e8] sm:$0xff]
    %v551 = vld [vmem:[%s1 + $0x9f0] sm:$0xff]
    %v552 = vld [vmem:[%s1 + $0x9f8] sm:$0xff]
    %v553 = vld [vmem:[%s1 + $0xa00] sm:$0xff]
    %v554 = vld [vmem:[%s1 + $0xa08] sm:$0xff]
    %v555 = vld [vmem:[%s1 + $0xa10] sm:$0xff]
    %v556 = vld [vmem:[%s1 + $0xa18] sm:$0xff]
    %v557 = vld [vmem:[%s1 + $0xa20] sm:$0xff]
    %v558 = vld [vmem:[%s1 + $0xa28] sm:$0xff]
    %v559 = vld [vmem:[%s1 + $0xa30] sm:$0xff]
    %v560 = vld [vmem:[%s1 + $0xa38] sm:$0xff]
    %v561 = vld [vmem:[%s1 + $0xa40] sm:$0xff]
    %v562 = vld [vmem:[%s1 + $0xa48] sm:$0xff]
    %v563 = vld [vmem:[%s1 + $0xa50] sm:$0xff]
    %v564 = vld [vmem:[%s1 + $0xa58] sm:$0xff]
    %v565 = vld [vmem:[%s1 + $0xa60] sm:$0xff]
    %v566 = vld [vmem:[%s1 + $0xa68] sm:$0xff]
    %v567 = vld [vmem:[%s1 + $0xa70] sm:$0xff]
    %v568 = vld [vmem:[%s1 + $0xa78] sm:$0xff]
    %v569 = vld [vmem:[%s1 + $0xa80] sm:$0xff]
    %v570 = vld [vmem:[%s1 + $0xa88] sm:$0xff]
    %v571 = vld [vmem:[%s1 + $0xa90] sm:$0xff]
    %v572 = vld [vmem:[%s1 + $0xa98] sm:$0xff]
    %v573 = vld [vmem:[%s1 + $0xaa0] sm:$0xff]
    %v574 = vld [vmem:[%s1 + $0xaa8] sm:$0xff]
    %v575 = vld [vmem:[%s1 + $0xab0] sm:$0xff]
    %v576 = vld [vmem:[%s1 + $0xab8] sm:$0xff]
    %v577 = vld [vmem:[%s1 + $0xac0] sm:$0xff]
    %v578 = vld [vmem:[%s1 + $0xac8] sm:$0xff]
    %v579 = vld [vmem:[%s1 + $0xad0] sm:$0xff]
    %v580 = vld [vmem:[%s1 + $0xad8] sm:$0xff]
    %v581 = vld [vmem:[%s1 + $0xae0] sm:$0xff]
    %v582 = vld [vmem:[%s1 + $0xae8] sm:$0xff]
    %v583 = vld [vmem:[%s1 + $0xaf0] sm:$0xff]
    %v584 = vld [vmem:[%s1 + $0xaf8] sm:$0xff]
    %v585 = vld [vmem:[%s1 + $0xb00] sm:$0xff]
    %v586 = vld [vmem:[%s1 + $0xb08] sm:$0xff]
    %v587 = vld [vmem:[%s1 + $0xb10] sm:$0xff]
    %v588 = vld [vmem:[%s1 + $0xb18] sm:$0xff]
    %v589 = vld [vmem:[%s1 + $0xb20] sm:$0xff]
    %v590 = vld [vmem:[%s1 + $0xb28] sm:$0xff]
    %v591 = vld [vmem:[%s1 + $0xb30] sm:$0xff]
    %v592 = vld [vmem:[%s1 + $0xb38] sm:$0xff]
    %v593 = vld [vmem:[%s1 + $0xb40] sm:$0xff]
    %v594 = vld [vmem:[%s1 + $0xb48] sm:$0xff]
    %v595 = vld [vmem:[%s1 + $0xb50] sm:$0xff]
    %v596 = vld [vmem:[%s1 + $0xb58] sm:$0xff]
    %v597 = vld [vmem:[%s1 + $0xb60] sm:$0xff]
    %v598 = vld [vmem:[%s1 + $0xb68] sm:$0xff]
    %v599 = vld [vmem:[%s1 + $0xb70] sm:$0xff]
    %v600 = vld [vmem:[%s1 + $0xb78] sm:$0xff]
    %v601 = vld [vmem:[%s1 + $0xb80] sm:$0xff]
    %v602 = vld [vmem:[%s1 + $0xb88] sm:$0xff]
    %v603 = vld [vmem:[%s1 + $0xb90] sm:$0xff]
    %v604 = vld [vmem:[%s1 + $0xb98] sm:$0xff]
    %v605 = vld [vmem:[%s1 + $0xba0] sm:$0xff]
    %v606 = vld [vmem:[%s1 + $0xba8] sm:$0xff]
    %v607 = vld [vmem:[%s1 + $0xbb0] sm:$0xff]
    %v608 = vld [vmem:[%s1 + $0xbb8] sm:$0xff]
    %v609 = vld [vmem:[%s1 + $0xbc0] sm:$0xff]
    %v610 = vld [vmem:[%s1 + $0xbc8] sm:$0xff]
    %v611 = vld [vmem:[%s1 + $0xbd0] sm:$0xff]
    %v612 = vld [vmem:[%s1 + $0xbd8] sm:$0xff]
    %v613 = vld [vmem:[%s1 + $0xbe0] sm:$0xff]
    %v614 = vld [vmem:[%s1 + $0xbe8] sm:$0xff]
    %v615 = vld [vmem:[%s1 + $0xbf0] sm:$0xff]
    %v616 = vld [vmem:[%s1 + $0xbf8] sm:$0xff]
    %v617 = vld [vmem:[%s1 + $0xc00] sm:$0xff]
    %v618 = vld [vmem:[%s1 + $0xc08] sm:$0xff]
    %v619 = vld [vmem:[%s1 + $0xc10] sm:$0xff]
    %v620 = vld [vmem:[%s1 + $0xc18] sm:$0xff]
    %v621 = vld [vmem:[%s1 + $0xc20] sm:$0xff]
    %v622 = vld [vmem:[%s1 + $0xc28] sm:$0xff]
    %v623 = vld [vmem:[%s1 + $0xc30] sm:$0xff]
    %v624 = vld [vmem:[%s1 + $0xc38] sm:$0xff]
    %v625 = vld [vmem:[%s1 + $0xc40] sm:$0xff]
    %v626 = vld [vmem:[%s1 + $0xc48] sm:$0xff]
    %v627 = vld [vmem:[%s1 + $0xc50] sm:$0xff]
    %v628 = vld [vmem:[%s1 + $0xc58] sm:$0xff]
    %v629 = vld [vmem:[%s1 + $0xc60] sm:$0xff]
    %v630 = vld [vmem:[%s1 + $0xc68] sm:$0xff]
    %v631 = vld [vmem:[%s1 + $0xc70] sm:$0xff]
    %v632 = vld [vmem:[%s1 + $0xc78] sm:$0xff]
    %v633 = vld [vmem:[%s1 + $0xc80] sm:$0xff]
    %v634 = vld [vmem:[%s1 + $0xc88] sm:$0xff]
    %v635 = vld [vmem:[%s1 + $0xc90] sm:$0xff]
    %v636 = vld [vmem:[%s1 + $0xc98] sm:$0xff]
    %v637 = vld [vmem:[%s1 + $0xca0] sm:$0xff]
    %v638 = vld [vmem:[%s1 + $0xca8] sm:$0xff]
    %v639 = vld [vmem:[%s1 + $0xcb0] sm:$0xff]
    %v640 = vld [vmem:[%s1 + $0xcb8] sm:$0xff]
    %v641 = vld [vmem:[%s1 + $0xcc0] sm:$0xff]
    %v642 = vld [vmem:[%s1 + $0xcc8] sm:$0xff]
    %v643 = vld [vmem:[%s1 + $0xcd0] sm:$0xff]
    %v644 = vld [vmem:[%s1 + $0xcd8] sm:$0xff]
    %v645 = vld [vmem:[%s1 + $0xce0] sm:$0xff]
    %v646 = vld [vmem:[%s1 + $0xce8] sm:$0xff]
    %v647 = vld [vmem:[%s1 + $0xcf0] sm:$0xff]
    %v648 = vld [vmem:[%s1 + $0xcf8] sm:$0xff]
    %v649 = vld [vmem:[%s1 + $0xd00] sm:$0xff]
    %v650 = vld [vmem:[%s1 + $0xd08] sm:$0xff]
    %v651 = vld [vmem:[%s1 + $0xd10] sm:$0xff]
    %v652 = vld [vmem:[%s1 + $0xd18] sm:$0xff]
    %v653 = vld [vmem:[%s1 + $0xd20] sm:$0xff]
    %v654 = vld [vmem:[%s1 + $0xd28] sm:$0xff]
    %v655 = vld [vmem:[%s1 + $0xd30] sm:$0xff]
    %v656 = vld [vmem:[%s1 + $0xd38] sm:$0xff]
    %v657 = vld [vmem:[%s1 + $0xd40] sm:$0xff]
    %v658 = vld [vmem:[%s1 + $0xd48] sm:$0xff]
    %v659 = vld [vmem:[%s1 + $0xd50] sm:$0xff]
    %v660 = vld [vmem:[%s1 + $0xd58] sm:$0xff]
    %v661 = vld [vmem:[%s1 + $0xd60] sm:$0xff]
    %v662 = vld [vmem:[%s1 + $0xd68] sm:$0xff]
    %v663 = vld [vmem:[%s1 + $0xd70] sm:$0xff]
    %v664 = vld [vmem:[%s1 + $0xd78] sm:$0xff]
    %v665 = vld [vmem:[%s1 + $0xd80] sm:$0xff]
    %v666 = vld [vmem:[%s1 + $0xd88] sm:$0xff]
    %v667 = vld [vmem:[%s1 + $0xd90] sm:$0xff]
    %v668 = vld [vmem:[%s1 + $0xd98] sm:$0xff]
    %v669 = vld [vmem:[%s1 + $0xda0] sm:$0xff]
    %v670 = vld [vmem:[%s1 + $0xda8] sm:$0xff]
    %v671 = vld [vmem:[%s1 + $0xdb0] sm:$0xff]
    %v672 = vld [vmem:[%s1 + $0xdb8] sm:$0xff]
    %v673 = vld [vmem:[%s1 + $0xdc0] sm:$0xff]
    %v674 = vld [vmem:[%s1 + $0xdc8] sm:$0xff]
    %v675 = vld [vmem:[%s1 + $0xdd0] sm:$0xff]
    %v676 = vld [vmem:[%s1 + $0xdd8] sm:$0xff]
    %v677 = vld [vmem:[%s1 + $0xde0] sm:$0xff]
    %v678 = vld [vmem:[%s1 + $0xde8] sm:$0xff]
    %v679 = vld [vmem:[%s1 + $0xdf0] sm:$0xff]
    %v680 = vld [vmem:[%s1 + $0xdf8] sm:$0xff]
    %v681 = vld [vmem:[%s1 + $0xe00] sm:$0xff]
    %v682 = vld [vmem:[%s1 + $0xe08] sm:$0xff]
    %v683 = vld [vmem:[%s1 + $0xe10] sm:$0xff]
    %v684 = vld [vmem:[%s1 + $0xe18] sm:$0xff]
    %v685 = vld [vmem:[%s1 + $0xe20] sm:$0xff]
    %v686 = vld [vmem:[%s1 + $0xe28] sm:$0xff]
    %v687 = vld [vmem:[%s1 + $0xe30] sm:$0xff]
    %v688 = vld [vmem:[%s1 + $0xe38] sm:$0xff]
    %v689 = vld [vmem:[%s1 + $0xe40] sm:$0xff]
    %v690 = vld [vmem:[%s1 + $0xe48] sm:$0xff]
    %v691 = vld [vmem:[%s1 + $0xe50] sm:$0xff]
    %v692 = vld [vmem:[%s1 + $0xe58] sm:$0xff]
    %v693 = vld [vmem:[%s1 + $0xe60] sm:$0xff]
    %v694 = vld [vmem:[%s1 + $0xe68] sm:$0xff]
    %v695 = vld [vmem:[%s1 + $0xe70] sm:$0xff]
    %v696 = vld [vmem:[%s1 + $0xe78] sm:$0xff]
    %v697 = vld [vmem:[%s1 + $0xe80] sm:$0xff]
    %v698 = vld [vmem:[%s1 + $0xe88] sm:$0xff]
    %v699 = vld [vmem:[%s1 + $0xe90] sm:$0xff]
    %v700 = vld [vmem:[%s1 + $0xe98] sm:$0xff]
    %v701 = vld [vmem:[%s1 + $0xea0] sm:$0xff]
    %v702 = vld [vmem:[%s1 + $0xea8] sm:$0xff]
    %v703 = vld [vmem:[%s1 + $0xeb0] sm:$0xff]
    %v704 = vld [vmem:[%s1 + $0xeb8] sm:$0xff]
    %v705 = vld [vmem:[%s1 + $0xec0] sm:$0xff]
    %v706 = vld [vmem:[%s1 + $0xec8] sm:$0xff]
    %v707 = vld [vmem:[%s1 + $0xed0] sm:$0xff]
    %v708 = vld [vmem:[%s1 + $0xed8] sm:$0xff]
    %v709 = vld [vmem:[%s1 + $0xee0] sm:$0xff]
    %v710 = vld [vmem:[%s1 + $0xee8] sm:$0xff]
    %v711 = vld [vmem:[%s1 + $0xef0] sm:$0xff]
    %v712 = vld [vmem:[%s1 + $0xef8] sm:$0xff]
    %v713 = vld [vmem:[%s1 + $0xf00] sm:$0xff]
    %v714 = vld [vmem:[%s1 + $0xf08] sm:$0xff]
    %v715 = vld [vmem:[%s1 + $0xf10] sm:$0xff]
    %v716 = vld [vmem:[%s1 + $0xf18] sm:$0xff]
    %v717 = vld [vmem:[%s1 + $0xf20] sm:$0xff]
    %v718 = vld [vmem:[%s1 + $0xf28] sm:$0xff]
    %v719 = vld [vmem:[%s1 + $0xf30] sm:$0xff]
    %v720 = vld [vmem:[%s1 + $0xf38] sm:$0xff]
    %v721 = vld [vmem:[%s1 + $0xf40] sm:$0xff]
    %v722 = vld [vmem:[%s1 + $0xf48] sm:$0xff]
    %v723 = vld [vmem:[%s1 + $0xf50] sm:$0xff]
    %v724 = vld [vmem:[%s1 + $0xf58] sm:$0xff]
    %v725 = vld [vmem:[%s1 + $0xf60] sm:$0xff]
    %v726 = vld [vmem:[%s1 + $0xf68] sm:$0xff]
    %v727 = vld [vmem:[%s1 + $0xf70] sm:$0xff]
    %v728 = vld [vmem:[%s1 + $0xf78] sm:$0xff]
    %v729 = vld [vmem:[%s1 + $0xf80] sm:$0xff]
    %v730 = vld [vmem:[%s1 + $0xf88] sm:$0xff]
    %v731 = vld [vmem:[%s1 + $0xf90] sm:$0xff]
    %v732 = vld [vmem:[%s1 + $0xf98] sm:$0xff]
    %v733 = vld [vmem:[%s1 + $0xfa0] sm:$0xff]
    %v734 = vld [vmem:[%s1 + $0xfa8] sm:$0xff]
    %v735 = vld [vmem:[%s1 + $0xfb0] sm:$0xff]
    %v736 = vld [vmem:[%s1 + $0xfb8] sm:$0xff]
    %v737 = vld [vmem:[%s1 + $0xfc0] sm:$0xff]
    %v738 = vld [vmem:[%s1 + $0xfc8] sm:$0xff]
    %v739 = vld [vmem:[%s1 + $0xfd0] sm:$0xff]
    %v740 = vld [vmem:[%s1 + $0xfd8] sm:$0xff]
    %v741 = vld [vmem:[%s1 + $0xfe0] sm:$0xff]
    %v742 = vld [vmem:[%s1 + $0xfe8] sm:$0xff]
    %v743 = vld [vmem:[%s1 + $0xff0] sm:$0xff]
    %v744 = vld [vmem:[%s1 + $0xff8] sm:$0xff]
    %v745 = vld [vmem:[%s2] sm:$0x3]
    %v747 = vlaneseq
    %v748 = vshrl.u32 %v747, 7
    %v749 = vsub.s32 0, %v748
    %v750 = vrot.slane %v745, %v749
    %v751 = vlaneseq
    %v752 = vshrl.u32 %v751, 7
    %v753 = vsub.s32 1, %v752
    %v754 = vrot.slane %v745, %v753
    %v1269 = vunpack.c.l.b16 %v233
    %v1270 = vunpack.c.h.b16 %v233
    %v1271 = vunpack.c.l.b16 %v234
    %v1272 = vunpack.c.h.b16 %v234
    %v1273 = vunpack.c.l.b16 %v235
    %v1274 = vunpack.c.h.b16 %v235
    %v1275 = vunpack.c.l.b16 %v236
    %v1276 = vunpack.c.h.b16 %v236
    %v1277 = vunpack.c.l.b16 %v237
    %v1278 = vunpack.c.h.b16 %v237
    %v1279 = vunpack.c.l.b16 %v238
    %v1280 = vunpack.c.h.b16 %v238
    %v1281 = vunpack.c.l.b16 %v239
    %v1282 = vunpack.c.h.b16 %v239
    %v1283 = vunpack.c.l.b16 %v240
    %v1284 = vunpack.c.h.b16 %v240
    %v1285 = vunpack.c.l.b16 %v241
    %v1286 = vunpack.c.h.b16 %v241
    %v1287 = vunpack.c.l.b16 %v242
    %v1288 = vunpack.c.h.b16 %v242
    %v1289 = vunpack.c.l.b16 %v243
    %v1290 = vunpack.c.h.b16 %v243
    %v1291 = vunpack.c.l.b16 %v244
    %v1292 = vunpack.c.h.b16 %v244
    %v1293 = vunpack.c.l.b16 %v245
    %v1294 = vunpack.c.h.b16 %v245
    %v1295 = vunpack.c.l.b16 %v246
    %v1296 = vunpack.c.h.b16 %v246
    %v1297 = vunpack.c.l.b16 %v247
    %v1298 = vunpack.c.h.b16 %v247
    %v1299 = vunpack.c.l.b16 %v248
    %v1300 = vunpack.c.h.b16 %v248
    %v1301 = vunpack.c.l.b16 %v249
    %v1302 = vunpack.c.h.b16 %v249
    %v1303 = vunpack.c.l.b16 %v250
    %v1304 = vunpack.c.h.b16 %v250
    %v1305 = vunpack.c.l.b16 %v251
    %v1306 = vunpack.c.h.b16 %v251
    %v1307 = vunpack.c.l.b16 %v252
    %v1308 = vunpack.c.h.b16 %v252
    %v1309 = vunpack.c.l.b16 %v253
    %v1310 = vunpack.c.h.b16 %v253
    %v1311 = vunpack.c.l.b16 %v254
    %v1312 = vunpack.c.h.b16 %v254
    %v1313 = vunpack.c.l.b16 %v255
    %v1314 = vunpack.c.h.b16 %v255
    %v1315 = vunpack.c.l.b16 %v256
    %v1316 = vunpack.c.h.b16 %v256
    %v1317 = vunpack.c.l.b16 %v257
    %v1318 = vunpack.c.h.b16 %v257
    %v1319 = vunpack.c.l.b16 %v258
    %v1320 = vunpack.c.h.b16 %v258
    %v1321 = vunpack.c.l.b16 %v259
    %v1322 = vunpack.c.h.b16 %v259
    %v1323 = vunpack.c.l.b16 %v260
    %v1324 = vunpack.c.h.b16 %v260
    %v1325 = vunpack.c.l.b16 %v261
    %v1326 = vunpack.c.h.b16 %v261
    %v1327 = vunpack.c.l.b16 %v262
    %v1328 = vunpack.c.h.b16 %v262
    %v1329 = vunpack.c.l.b16 %v263
    %v1330 = vunpack.c.h.b16 %v263
    %v1331 = vunpack.c.l.b16 %v264
    %v1332 = vunpack.c.h.b16 %v264
    %v1333 = vunpack.c.l.b16 %v265
    %v1334 = vunpack.c.h.b16 %v265
    %v1335 = vunpack.c.l.b16 %v266
    %v1336 = vunpack.c.h.b16 %v266
    %v1337 = vunpack.c.l.b16 %v267
    %v1338 = vunpack.c.h.b16 %v267
    %v1339 = vunpack.c.l.b16 %v268
    %v1340 = vunpack.c.h.b16 %v268
    %v1341 = vunpack.c.l.b16 %v269
    %v1342 = vunpack.c.h.b16 %v269
    %v1343 = vunpack.c.l.b16 %v270
    %v1344 = vunpack.c.h.b16 %v270
    %v1345 = vunpack.c.l.b16 %v271
    %v1346 = vunpack.c.h.b16 %v271
    %v1347 = vunpack.c.l.b16 %v272
    %v1348 = vunpack.c.h.b16 %v272
    %v1349 = vunpack.c.l.b16 %v273
    %v1350 = vunpack.c.h.b16 %v273
    %v1351 = vunpack.c.l.b16 %v274
    %v1352 = vunpack.c.h.b16 %v274
    %v1353 = vunpack.c.l.b16 %v275
    %v1354 = vunpack.c.h.b16 %v275
    %v1355 = vunpack.c.l.b16 %v276
    %v1356 = vunpack.c.h.b16 %v276
    %v1357 = vunpack.c.l.b16 %v277
    %v1358 = vunpack.c.h.b16 %v277
    %v1359 = vunpack.c.l.b16 %v278
    %v1360 = vunpack.c.h.b16 %v278
    %v1361 = vunpack.c.l.b16 %v279
    %v1362 = vunpack.c.h.b16 %v279
    %v1363 = vunpack.c.l.b16 %v280
    %v1364 = vunpack.c.h.b16 %v280
    %v1365 = vunpack.c.l.b16 %v281
    %v1366 = vunpack.c.h.b16 %v281
    %v1367 = vunpack.c.l.b16 %v282
    %v1368 = vunpack.c.h.b16 %v282
    %v1369 = vunpack.c.l.b16 %v283
    %v1370 = vunpack.c.h.b16 %v283
    %v1371 = vunpack.c.l.b16 %v284
    %v1372 = vunpack.c.h.b16 %v284
    %v1373 = vunpack.c.l.b16 %v285
    %v1374 = vunpack.c.h.b16 %v285
    %v1375 = vunpack.c.l.b16 %v286
    %v1376 = vunpack.c.h.b16 %v286
    %v1377 = vunpack.c.l.b16 %v287
    %v1378 = vunpack.c.h.b16 %v287
    %v1379 = vunpack.c.l.b16 %v288
    %v1380 = vunpack.c.h.b16 %v288
    %v1381 = vunpack.c.l.b16 %v289
    %v1382 = vunpack.c.h.b16 %v289
    %v1383 = vunpack.c.l.b16 %v290
    %v1384 = vunpack.c.h.b16 %v290
    %v1385 = vunpack.c.l.b16 %v291
    %v1386 = vunpack.c.h.b16 %v291
    %v1387 = vunpack.c.l.b16 %v292
    %v1388 = vunpack.c.h.b16 %v292
    %v1389 = vunpack.c.l.b16 %v293
    %v1390 = vunpack.c.h.b16 %v293
    %v1391 = vunpack.c.l.b16 %v294
    %v1392 = vunpack.c.h.b16 %v294
    %v1393 = vunpack.c.l.b16 %v295
    %v1394 = vunpack.c.h.b16 %v295
    %v1395 = vunpack.c.l.b16 %v296
    %v1396 = vunpack.c.h.b16 %v296
    %v1397 = vunpack.c.l.b16 %v297
    %v1398 = vunpack.c.h.b16 %v297
    %v1399 = vunpack.c.l.b16 %v298
    %v1400 = vunpack.c.h.b16 %v298
    %v1401 = vunpack.c.l.b16 %v299
    %v1402 = vunpack.c.h.b16 %v299
    %v1403 = vunpack.c.l.b16 %v300
    %v1404 = vunpack.c.h.b16 %v300
    %v1405 = vunpack.c.l.b16 %v301
    %v1406 = vunpack.c.h.b16 %v301
    %v1407 = vunpack.c.l.b16 %v302
    %v1408 = vunpack.c.h.b16 %v302
    %v1409 = vunpack.c.l.b16 %v303
    %v1410 = vunpack.c.h.b16 %v303
    %v1411 = vunpack.c.l.b16 %v304
    %v1412 = vunpack.c.h.b16 %v304
    %v1413 = vunpack.c.l.b16 %v305
    %v1414 = vunpack.c.h.b16 %v305
    %v1415 = vunpack.c.l.b16 %v306
    %v1416 = vunpack.c.h.b16 %v306
    %v1417 = vunpack.c.l.b16 %v307
    %v1418 = vunpack.c.h.b16 %v307
    %v1419 = vunpack.c.l.b16 %v308
    %v1420 = vunpack.c.h.b16 %v308
    %v1421 = vunpack.c.l.b16 %v309
    %v1422 = vunpack.c.h.b16 %v309
    %v1423 = vunpack.c.l.b16 %v310
    %v1424 = vunpack.c.h.b16 %v310
    %v1425 = vunpack.c.l.b16 %v311
    %v1426 = vunpack.c.h.b16 %v311
    %v1427 = vunpack.c.l.b16 %v312
    %v1428 = vunpack.c.h.b16 %v312
    %v1429 = vunpack.c.l.b16 %v313
    %v1430 = vunpack.c.h.b16 %v313
    %v1431 = vunpack.c.l.b16 %v314
    %v1432 = vunpack.c.h.b16 %v314
    %v1433 = vunpack.c.l.b16 %v315
    %v1434 = vunpack.c.h.b16 %v315
    %v1435 = vunpack.c.l.b16 %v316
    %v1436 = vunpack.c.h.b16 %v316
    %v1437 = vunpack.c.l.b16 %v317
    %v1438 = vunpack.c.h.b16 %v317
    %v1439 = vunpack.c.l.b16 %v318
    %v1440 = vunpack.c.h.b16 %v318
    %v1441 = vunpack.c.l.b16 %v319
    %v1442 = vunpack.c.h.b16 %v319
    %v1443 = vunpack.c.l.b16 %v320
    %v1444 = vunpack.c.h.b16 %v320
    %v1445 = vunpack.c.l.b16 %v321
    %v1446 = vunpack.c.h.b16 %v321
    %v1447 = vunpack.c.l.b16 %v322
    %v1448 = vunpack.c.h.b16 %v322
    %v1449 = vunpack.c.l.b16 %v323
    %v1450 = vunpack.c.h.b16 %v323
    %v1451 = vunpack.c.l.b16 %v324
    %v1452 = vunpack.c.h.b16 %v324
    %v1453 = vunpack.c.l.b16 %v325
    %v1454 = vunpack.c.h.b16 %v325
    %v1455 = vunpack.c.l.b16 %v326
    %v1456 = vunpack.c.h.b16 %v326
    %v1457 = vunpack.c.l.b16 %v327
    %v1458 = vunpack.c.h.b16 %v327
    %v1459 = vunpack.c.l.b16 %v328
    %v1460 = vunpack.c.h.b16 %v328
    %v1461 = vunpack.c.l.b16 %v329
    %v1462 = vunpack.c.h.b16 %v329
    %v1463 = vunpack.c.l.b16 %v330
    %v1464 = vunpack.c.h.b16 %v330
    %v1465 = vunpack.c.l.b16 %v331
    %v1466 = vunpack.c.h.b16 %v331
    %v1467 = vunpack.c.l.b16 %v332
    %v1468 = vunpack.c.h.b16 %v332
    %v1469 = vunpack.c.l.b16 %v333
    %v1470 = vunpack.c.h.b16 %v333
    %v1471 = vunpack.c.l.b16 %v334
    %v1472 = vunpack.c.h.b16 %v334
    %v1473 = vunpack.c.l.b16 %v335
    %v1474 = vunpack.c.h.b16 %v335
    %v1475 = vunpack.c.l.b16 %v336
    %v1476 = vunpack.c.h.b16 %v336
    %v1477 = vunpack.c.l.b16 %v337
    %v1478 = vunpack.c.h.b16 %v337
    %v1479 = vunpack.c.l.b16 %v338
    %v1480 = vunpack.c.h.b16 %v338
    %v1481 = vunpack.c.l.b16 %v339
    %v1482 = vunpack.c.h.b16 %v339
    %v1483 = vunpack.c.l.b16 %v340
    %v1484 = vunpack.c.h.b16 %v340
    %v1485 = vunpack.c.l.b16 %v341
    %v1486 = vunpack.c.h.b16 %v341
    %v1487 = vunpack.c.l.b16 %v342
    %v1488 = vunpack.c.h.b16 %v342
    %v1489 = vunpack.c.l.b16 %v343
    %v1490 = vunpack.c.h.b16 %v343
    %v1491 = vunpack.c.l.b16 %v344
    %v1492 = vunpack.c.h.b16 %v344
    %v1493 = vunpack.c.l.b16 %v345
    %v1494 = vunpack.c.h.b16 %v345
    %v1495 = vunpack.c.l.b16 %v346
    %v1496 = vunpack.c.h.b16 %v346
    %v1497 = vunpack.c.l.b16 %v347
    %v1498 = vunpack.c.h.b16 %v347
    %v1499 = vunpack.c.l.b16 %v348
    %v1500 = vunpack.c.h.b16 %v348
    %v1501 = vunpack.c.l.b16 %v349
    %v1502 = vunpack.c.h.b16 %v349
    %v1503 = vunpack.c.l.b16 %v350
    %v1504 = vunpack.c.h.b16 %v350
    %v1505 = vunpack.c.l.b16 %v351
    %v1506 = vunpack.c.h.b16 %v351
    %v1507 = vunpack.c.l.b16 %v352
    %v1508 = vunpack.c.h.b16 %v352
    %v1509 = vunpack.c.l.b16 %v353
    %v1510 = vunpack.c.h.b16 %v353
    %v1511 = vunpack.c.l.b16 %v354
    %v1512 = vunpack.c.h.b16 %v354
    %v1513 = vunpack.c.l.b16 %v355
    %v1514 = vunpack.c.h.b16 %v355
    %v1515 = vunpack.c.l.b16 %v356
    %v1516 = vunpack.c.h.b16 %v356
    %v1517 = vunpack.c.l.b16 %v357
    %v1518 = vunpack.c.h.b16 %v357
    %v1519 = vunpack.c.l.b16 %v358
    %v1520 = vunpack.c.h.b16 %v358
    %v1521 = vunpack.c.l.b16 %v359
    %v1522 = vunpack.c.h.b16 %v359
    %v1523 = vunpack.c.l.b16 %v360
    %v1524 = vunpack.c.h.b16 %v360
    %v1525 = vunpack.c.l.b16 %v361
    %v1526 = vunpack.c.h.b16 %v361
    %v1527 = vunpack.c.l.b16 %v362
    %v1528 = vunpack.c.h.b16 %v362
    %v1529 = vunpack.c.l.b16 %v363
    %v1530 = vunpack.c.h.b16 %v363
    %v1531 = vunpack.c.l.b16 %v364
    %v1532 = vunpack.c.h.b16 %v364
    %v1533 = vunpack.c.l.b16 %v365
    %v1534 = vunpack.c.h.b16 %v365
    %v1535 = vunpack.c.l.b16 %v366
    %v1536 = vunpack.c.h.b16 %v366
    %v1537 = vunpack.c.l.b16 %v367
    %v1538 = vunpack.c.h.b16 %v367
    %v1539 = vunpack.c.l.b16 %v368
    %v1540 = vunpack.c.h.b16 %v368
    %v1541 = vunpack.c.l.b16 %v369
    %v1542 = vunpack.c.h.b16 %v369
    %v1543 = vunpack.c.l.b16 %v370
    %v1544 = vunpack.c.h.b16 %v370
    %v1545 = vunpack.c.l.b16 %v371
    %v1546 = vunpack.c.h.b16 %v371
    %v1547 = vunpack.c.l.b16 %v372
    %v1548 = vunpack.c.h.b16 %v372
    %v1549 = vunpack.c.l.b16 %v373
    %v1550 = vunpack.c.h.b16 %v373
    %v1551 = vunpack.c.l.b16 %v374
    %v1552 = vunpack.c.h.b16 %v374
    %v1553 = vunpack.c.l.b16 %v375
    %v1554 = vunpack.c.h.b16 %v375
    %v1555 = vunpack.c.l.b16 %v376
    %v1556 = vunpack.c.h.b16 %v376
    %v1557 = vunpack.c.l.b16 %v377
    %v1558 = vunpack.c.h.b16 %v377
    %v1559 = vunpack.c.l.b16 %v378
    %v1560 = vunpack.c.h.b16 %v378
    %v1561 = vunpack.c.l.b16 %v379
    %v1562 = vunpack.c.h.b16 %v379
    %v1563 = vunpack.c.l.b16 %v380
    %v1564 = vunpack.c.h.b16 %v380
    %v1565 = vunpack.c.l.b16 %v381
    %v1566 = vunpack.c.h.b16 %v381
    %v1567 = vunpack.c.l.b16 %v382
    %v1568 = vunpack.c.h.b16 %v382
    %v1569 = vunpack.c.l.b16 %v383
    %v1570 = vunpack.c.h.b16 %v383
    %v1571 = vunpack.c.l.b16 %v384
    %v1572 = vunpack.c.h.b16 %v384
    %v1573 = vunpack.c.l.b16 %v385
    %v1574 = vunpack.c.h.b16 %v385
    %v1575 = vunpack.c.l.b16 %v386
    %v1576 = vunpack.c.h.b16 %v386
    %v1577 = vunpack.c.l.b16 %v387
    %v1578 = vunpack.c.h.b16 %v387
    %v1579 = vunpack.c.l.b16 %v388
    %v1580 = vunpack.c.h.b16 %v388
    %v1581 = vunpack.c.l.b16 %v389
    %v1582 = vunpack.c.h.b16 %v389
    %v1583 = vunpack.c.l.b16 %v390
    %v1584 = vunpack.c.h.b16 %v390
    %v1585 = vunpack.c.l.b16 %v391
    %v1586 = vunpack.c.h.b16 %v391
    %v1587 = vunpack.c.l.b16 %v392
    %v1588 = vunpack.c.h.b16 %v392
    %v1589 = vunpack.c.l.b16 %v393
    %v1590 = vunpack.c.h.b16 %v393
    %v1591 = vunpack.c.l.b16 %v394
    %v1592 = vunpack.c.h.b16 %v394
    %v1593 = vunpack.c.l.b16 %v395
    %v1594 = vunpack.c.h.b16 %v395
    %v1595 = vunpack.c.l.b16 %v396
    %v1596 = vunpack.c.h.b16 %v396
    %v1597 = vunpack.c.l.b16 %v397
    %v1598 = vunpack.c.h.b16 %v397
    %v1599 = vunpack.c.l.b16 %v398
    %v1600 = vunpack.c.h.b16 %v398
    %v1601 = vunpack.c.l.b16 %v399
    %v1602 = vunpack.c.h.b16 %v399
    %v1603 = vunpack.c.l.b16 %v400
    %v1604 = vunpack.c.h.b16 %v400
    %v1605 = vunpack.c.l.b16 %v401
    %v1606 = vunpack.c.h.b16 %v401
    %v1607 = vunpack.c.l.b16 %v402
    %v1608 = vunpack.c.h.b16 %v402
    %v1609 = vunpack.c.l.b16 %v403
    %v1610 = vunpack.c.h.b16 %v403
    %v1611 = vunpack.c.l.b16 %v404
    %v1612 = vunpack.c.h.b16 %v404
    %v1613 = vunpack.c.l.b16 %v405
    %v1614 = vunpack.c.h.b16 %v405
    %v1615 = vunpack.c.l.b16 %v406
    %v1616 = vunpack.c.h.b16 %v406
    %v1617 = vunpack.c.l.b16 %v407
    %v1618 = vunpack.c.h.b16 %v407
    %v1619 = vunpack.c.l.b16 %v408
    %v1620 = vunpack.c.h.b16 %v408
    %v1621 = vunpack.c.l.b16 %v409
    %v1622 = vunpack.c.h.b16 %v409
    %v1623 = vunpack.c.l.b16 %v410
    %v1624 = vunpack.c.h.b16 %v410
    %v1625 = vunpack.c.l.b16 %v411
    %v1626 = vunpack.c.h.b16 %v411
    %v1627 = vunpack.c.l.b16 %v412
    %v1628 = vunpack.c.h.b16 %v412
    %v1629 = vunpack.c.l.b16 %v413
    %v1630 = vunpack.c.h.b16 %v413
    %v1631 = vunpack.c.l.b16 %v414
    %v1632 = vunpack.c.h.b16 %v414
    %v1633 = vunpack.c.l.b16 %v415
    %v1634 = vunpack.c.h.b16 %v415
    %v1635 = vunpack.c.l.b16 %v416
    %v1636 = vunpack.c.h.b16 %v416
    %v1637 = vunpack.c.l.b16 %v417
    %v1638 = vunpack.c.h.b16 %v417
    %v1639 = vunpack.c.l.b16 %v418
    %v1640 = vunpack.c.h.b16 %v418
    %v1641 = vunpack.c.l.b16 %v419
    %v1642 = vunpack.c.h.b16 %v419
    %v1643 = vunpack.c.l.b16 %v420
    %v1644 = vunpack.c.h.b16 %v420
    %v1645 = vunpack.c.l.b16 %v421
    %v1646 = vunpack.c.h.b16 %v421
    %v1647 = vunpack.c.l.b16 %v422
    %v1648 = vunpack.c.h.b16 %v422
    %v1649 = vunpack.c.l.b16 %v423
    %v1650 = vunpack.c.h.b16 %v423
    %v1651 = vunpack.c.l.b16 %v424
    %v1652 = vunpack.c.h.b16 %v424
    %v1653 = vunpack.c.l.b16 %v425
    %v1654 = vunpack.c.h.b16 %v425
    %v1655 = vunpack.c.l.b16 %v426
    %v1656 = vunpack.c.h.b16 %v426
    %v1657 = vunpack.c.l.b16 %v427
    %v1658 = vunpack.c.h.b16 %v427
    %v1659 = vunpack.c.l.b16 %v428
    %v1660 = vunpack.c.h.b16 %v428
    %v1661 = vunpack.c.l.b16 %v429
    %v1662 = vunpack.c.h.b16 %v429
    %v1663 = vunpack.c.l.b16 %v430
    %v1664 = vunpack.c.h.b16 %v430
    %v1665 = vunpack.c.l.b16 %v431
    %v1666 = vunpack.c.h.b16 %v431
    %v1667 = vunpack.c.l.b16 %v432
    %v1668 = vunpack.c.h.b16 %v432
    %v1669 = vunpack.c.l.b16 %v433
    %v1670 = vunpack.c.h.b16 %v433
    %v1671 = vunpack.c.l.b16 %v434
    %v1672 = vunpack.c.h.b16 %v434
    %v1673 = vunpack.c.l.b16 %v435
    %v1674 = vunpack.c.h.b16 %v435
    %v1675 = vunpack.c.l.b16 %v436
    %v1676 = vunpack.c.h.b16 %v436
    %v1677 = vunpack.c.l.b16 %v437
    %v1678 = vunpack.c.h.b16 %v437
    %v1679 = vunpack.c.l.b16 %v438
    %v1680 = vunpack.c.h.b16 %v438
    %v1681 = vunpack.c.l.b16 %v439
    %v1682 = vunpack.c.h.b16 %v439
    %v1683 = vunpack.c.l.b16 %v440
    %v1684 = vunpack.c.h.b16 %v440
    %v1685 = vunpack.c.l.b16 %v441
    %v1686 = vunpack.c.h.b16 %v441
    %v1687 = vunpack.c.l.b16 %v442
    %v1688 = vunpack.c.h.b16 %v442
    %v1689 = vunpack.c.l.b16 %v443
    %v1690 = vunpack.c.h.b16 %v443
    %v1691 = vunpack.c.l.b16 %v444
    %v1692 = vunpack.c.h.b16 %v444
    %v1693 = vunpack.c.l.b16 %v445
    %v1694 = vunpack.c.h.b16 %v445
    %v1695 = vunpack.c.l.b16 %v446
    %v1696 = vunpack.c.h.b16 %v446
    %v1697 = vunpack.c.l.b16 %v447
    %v1698 = vunpack.c.h.b16 %v447
    %v1699 = vunpack.c.l.b16 %v448
    %v1700 = vunpack.c.h.b16 %v448
    %v1701 = vunpack.c.l.b16 %v449
    %v1702 = vunpack.c.h.b16 %v449
    %v1703 = vunpack.c.l.b16 %v450
    %v1704 = vunpack.c.h.b16 %v450
    %v1705 = vunpack.c.l.b16 %v451
    %v1706 = vunpack.c.h.b16 %v451
    %v1707 = vunpack.c.l.b16 %v452
    %v1708 = vunpack.c.h.b16 %v452
    %v1709 = vunpack.c.l.b16 %v453
    %v1710 = vunpack.c.h.b16 %v453
    %v1711 = vunpack.c.l.b16 %v454
    %v1712 = vunpack.c.h.b16 %v454
    %v1713 = vunpack.c.l.b16 %v455
    %v1714 = vunpack.c.h.b16 %v455
    %v1715 = vunpack.c.l.b16 %v456
    %v1716 = vunpack.c.h.b16 %v456
    %v1717 = vunpack.c.l.b16 %v457
    %v1718 = vunpack.c.h.b16 %v457
    %v1719 = vunpack.c.l.b16 %v458
    %v1720 = vunpack.c.h.b16 %v458
    %v1721 = vunpack.c.l.b16 %v459
    %v1722 = vunpack.c.h.b16 %v459
    %v1723 = vunpack.c.l.b16 %v460
    %v1724 = vunpack.c.h.b16 %v460
    %v1725 = vunpack.c.l.b16 %v461
    %v1726 = vunpack.c.h.b16 %v461
    %v1727 = vunpack.c.l.b16 %v462
    %v1728 = vunpack.c.h.b16 %v462
    %v1729 = vunpack.c.l.b16 %v463
    %v1730 = vunpack.c.h.b16 %v463
    %v1731 = vunpack.c.l.b16 %v464
    %v1732 = vunpack.c.h.b16 %v464
    %v1733 = vunpack.c.l.b16 %v465
    %v1734 = vunpack.c.h.b16 %v465
    %v1735 = vunpack.c.l.b16 %v466
    %v1736 = vunpack.c.h.b16 %v466
    %v1737 = vunpack.c.l.b16 %v467
    %v1738 = vunpack.c.h.b16 %v467
    %v1739 = vunpack.c.l.b16 %v468
    %v1740 = vunpack.c.h.b16 %v468
    %v1741 = vunpack.c.l.b16 %v469
    %v1742 = vunpack.c.h.b16 %v469
    %v1743 = vunpack.c.l.b16 %v470
    %v1744 = vunpack.c.h.b16 %v470
    %v1745 = vunpack.c.l.b16 %v471
    %v1746 = vunpack.c.h.b16 %v471
    %v1747 = vunpack.c.l.b16 %v472
    %v1748 = vunpack.c.h.b16 %v472
    %v1749 = vunpack.c.l.b16 %v473
    %v1750 = vunpack.c.h.b16 %v473
    %v1751 = vunpack.c.l.b16 %v474
    %v1752 = vunpack.c.h.b16 %v474
    %v1753 = vunpack.c.l.b16 %v475
    %v1754 = vunpack.c.h.b16 %v475
    %v1755 = vunpack.c.l.b16 %v476
    %v1756 = vunpack.c.h.b16 %v476
    %v1757 = vunpack.c.l.b16 %v477
    %v1758 = vunpack.c.h.b16 %v477
    %v1759 = vunpack.c.l.b16 %v478
    %v1760 = vunpack.c.h.b16 %v478
    %v1761 = vunpack.c.l.b16 %v479
    %v1762 = vunpack.c.h.b16 %v479
    %v1763 = vunpack.c.l.b16 %v480
    %v1764 = vunpack.c.h.b16 %v480
    %v1765 = vunpack.c.l.b16 %v481
    %v1766 = vunpack.c.h.b16 %v481
    %v1767 = vunpack.c.l.b16 %v482
    %v1768 = vunpack.c.h.b16 %v482
    %v1769 = vunpack.c.l.b16 %v483
    %v1770 = vunpack.c.h.b16 %v483
    %v1771 = vunpack.c.l.b16 %v484
    %v1772 = vunpack.c.h.b16 %v484
    %v1773 = vunpack.c.l.b16 %v485
    %v1774 = vunpack.c.h.b16 %v485
    %v1775 = vunpack.c.l.b16 %v486
    %v1776 = vunpack.c.h.b16 %v486
    %v1777 = vunpack.c.l.b16 %v487
    %v1778 = vunpack.c.h.b16 %v487
    %v1779 = vunpack.c.l.b16 %v488
    %v1780 = vunpack.c.h.b16 %v488
    %v1781 = vunpack.c.l.b16 %v489
    %v1782 = vunpack.c.h.b16 %v489
    %v1783 = vunpack.c.l.b16 %v490
    %v1784 = vunpack.c.h.b16 %v490
    %v1785 = vunpack.c.l.b16 %v491
    %v1786 = vunpack.c.h.b16 %v491
    %v1787 = vunpack.c.l.b16 %v492
    %v1788 = vunpack.c.h.b16 %v492
    %v1789 = vunpack.c.l.b16 %v493
    %v1790 = vunpack.c.h.b16 %v493
    %v1791 = vunpack.c.l.b16 %v494
    %v1792 = vunpack.c.h.b16 %v494
    %v1793 = vunpack.c.l.b16 %v495
    %v1794 = vunpack.c.h.b16 %v495
    %v1795 = vunpack.c.l.b16 %v496
    %v1796 = vunpack.c.h.b16 %v496
    %v1797 = vunpack.c.l.b16 %v497
    %v1798 = vunpack.c.h.b16 %v497
    %v1799 = vunpack.c.l.b16 %v498
    %v1800 = vunpack.c.h.b16 %v498
    %v1801 = vunpack.c.l.b16 %v499
    %v1802 = vunpack.c.h.b16 %v499
    %v1803 = vunpack.c.l.b16 %v500
    %v1804 = vunpack.c.h.b16 %v500
    %v1805 = vunpack.c.l.b16 %v501
    %v1806 = vunpack.c.h.b16 %v501
    %v1807 = vunpack.c.l.b16 %v502
    %v1808 = vunpack.c.h.b16 %v502
    %v1809 = vunpack.c.l.b16 %v503
    %v1810 = vunpack.c.h.b16 %v503
    %v1811 = vunpack.c.l.b16 %v504
    %v1812 = vunpack.c.h.b16 %v504
    %v1813 = vunpack.c.l.b16 %v505
    %v1814 = vunpack.c.h.b16 %v505
    %v1815 = vunpack.c.l.b16 %v506
    %v1816 = vunpack.c.h.b16 %v506
    %v1817 = vunpack.c.l.b16 %v507
    %v1818 = vunpack.c.h.b16 %v507
    %v1819 = vunpack.c.l.b16 %v508
    %v1820 = vunpack.c.h.b16 %v508
    %v1821 = vunpack.c.l.b16 %v509
    %v1822 = vunpack.c.h.b16 %v509
    %v1823 = vunpack.c.l.b16 %v510
    %v1824 = vunpack.c.h.b16 %v510
    %v1825 = vunpack.c.l.b16 %v511
    %v1826 = vunpack.c.h.b16 %v511
    %v1827 = vunpack.c.l.b16 %v512
    %v1828 = vunpack.c.h.b16 %v512
    %v1829 = vunpack.c.l.b16 %v513
    %v1830 = vunpack.c.h.b16 %v513
    %v1831 = vunpack.c.l.b16 %v514
    %v1832 = vunpack.c.h.b16 %v514
    %v1833 = vunpack.c.l.b16 %v515
    %v1834 = vunpack.c.h.b16 %v515
    %v1835 = vunpack.c.l.b16 %v516
    %v1836 = vunpack.c.h.b16 %v516
    %v1837 = vunpack.c.l.b16 %v517
    %v1838 = vunpack.c.h.b16 %v517
    %v1839 = vunpack.c.l.b16 %v518
    %v1840 = vunpack.c.h.b16 %v518
    %v1841 = vunpack.c.l.b16 %v519
    %v1842 = vunpack.c.h.b16 %v519
    %v1843 = vunpack.c.l.b16 %v520
    %v1844 = vunpack.c.h.b16 %v520
    %v1845 = vunpack.c.l.b16 %v521
    %v1846 = vunpack.c.h.b16 %v521
    %v1847 = vunpack.c.l.b16 %v522
    %v1848 = vunpack.c.h.b16 %v522
    %v1849 = vunpack.c.l.b16 %v523
    %v1850 = vunpack.c.h.b16 %v523
    %v1851 = vunpack.c.l.b16 %v524
    %v1852 = vunpack.c.h.b16 %v524
    %v1853 = vunpack.c.l.b16 %v525
    %v1854 = vunpack.c.h.b16 %v525
    %v1855 = vunpack.c.l.b16 %v526
    %v1856 = vunpack.c.h.b16 %v526
    %v1857 = vunpack.c.l.b16 %v527
    %v1858 = vunpack.c.h.b16 %v527
    %v1859 = vunpack.c.l.b16 %v528
    %v1860 = vunpack.c.h.b16 %v528
    %v1861 = vunpack.c.l.b16 %v529
    %v1862 = vunpack.c.h.b16 %v529
    %v1863 = vunpack.c.l.b16 %v530
    %v1864 = vunpack.c.h.b16 %v530
    %v1865 = vunpack.c.l.b16 %v531
    %v1866 = vunpack.c.h.b16 %v531
    %v1867 = vunpack.c.l.b16 %v532
    %v1868 = vunpack.c.h.b16 %v532
    %v1869 = vunpack.c.l.b16 %v533
    %v1870 = vunpack.c.h.b16 %v533
    %v1871 = vunpack.c.l.b16 %v534
    %v1872 = vunpack.c.h.b16 %v534
    %v1873 = vunpack.c.l.b16 %v535
    %v1874 = vunpack.c.h.b16 %v535
    %v1875 = vunpack.c.l.b16 %v536
    %v1876 = vunpack.c.h.b16 %v536
    %v1877 = vunpack.c.l.b16 %v537
    %v1878 = vunpack.c.h.b16 %v537
    %v1879 = vunpack.c.l.b16 %v538
    %v1880 = vunpack.c.h.b16 %v538
    %v1881 = vunpack.c.l.b16 %v539
    %v1882 = vunpack.c.h.b16 %v539
    %v1883 = vunpack.c.l.b16 %v540
    %v1884 = vunpack.c.h.b16 %v540
    %v1885 = vunpack.c.l.b16 %v541
    %v1886 = vunpack.c.h.b16 %v541
    %v1887 = vunpack.c.l.b16 %v542
    %v1888 = vunpack.c.h.b16 %v542
    %v1889 = vunpack.c.l.b16 %v543
    %v1890 = vunpack.c.h.b16 %v543
    %v1891 = vunpack.c.l.b16 %v544
    %v1892 = vunpack.c.h.b16 %v544
    %v1893 = vunpack.c.l.b16 %v545
    %v1894 = vunpack.c.h.b16 %v545
    %v1895 = vunpack.c.l.b16 %v546
    %v1896 = vunpack.c.h.b16 %v546
    %v1897 = vunpack.c.l.b16 %v547
    %v1898 = vunpack.c.h.b16 %v547
    %v1899 = vunpack.c.l.b16 %v548
    %v1900 = vunpack.c.h.b16 %v548
    %v1901 = vunpack.c.l.b16 %v549
    %v1902 = vunpack.c.h.b16 %v549
    %v1903 = vunpack.c.l.b16 %v550
    %v1904 = vunpack.c.h.b16 %v550
    %v1905 = vunpack.c.l.b16 %v551
    %v1906 = vunpack.c.h.b16 %v551
    %v1907 = vunpack.c.l.b16 %v552
    %v1908 = vunpack.c.h.b16 %v552
    %v1909 = vunpack.c.l.b16 %v553
    %v1910 = vunpack.c.h.b16 %v553
    %v1911 = vunpack.c.l.b16 %v554
    %v1912 = vunpack.c.h.b16 %v554
    %v1913 = vunpack.c.l.b16 %v555
    %v1914 = vunpack.c.h.b16 %v555
    %v1915 = vunpack.c.l.b16 %v556
    %v1916 = vunpack.c.h.b16 %v556
    %v1917 = vunpack.c.l.b16 %v557
    %v1918 = vunpack.c.h.b16 %v557
    %v1919 = vunpack.c.l.b16 %v558
    %v1920 = vunpack.c.h.b16 %v558
    %v1921 = vunpack.c.l.b16 %v559
    %v1922 = vunpack.c.h.b16 %v559
    %v1923 = vunpack.c.l.b16 %v560
    %v1924 = vunpack.c.h.b16 %v560
    %v1925 = vunpack.c.l.b16 %v561
    %v1926 = vunpack.c.h.b16 %v561
    %v1927 = vunpack.c.l.b16 %v562
    %v1928 = vunpack.c.h.b16 %v562
    %v1929 = vunpack.c.l.b16 %v563
    %v1930 = vunpack.c.h.b16 %v563
    %v1931 = vunpack.c.l.b16 %v564
    %v1932 = vunpack.c.h.b16 %v564
    %v1933 = vunpack.c.l.b16 %v565
    %v1934 = vunpack.c.h.b16 %v565
    %v1935 = vunpack.c.l.b16 %v566
    %v1936 = vunpack.c.h.b16 %v566
    %v1937 = vunpack.c.l.b16 %v567
    %v1938 = vunpack.c.h.b16 %v567
    %v1939 = vunpack.c.l.b16 %v568
    %v1940 = vunpack.c.h.b16 %v568
    %v1941 = vunpack.c.l.b16 %v569
    %v1942 = vunpack.c.h.b16 %v569
    %v1943 = vunpack.c.l.b16 %v570
    %v1944 = vunpack.c.h.b16 %v570
    %v1945 = vunpack.c.l.b16 %v571
    %v1946 = vunpack.c.h.b16 %v571
    %v1947 = vunpack.c.l.b16 %v572
    %v1948 = vunpack.c.h.b16 %v572
    %v1949 = vunpack.c.l.b16 %v573
    %v1950 = vunpack.c.h.b16 %v573
    %v1951 = vunpack.c.l.b16 %v574
    %v1952 = vunpack.c.h.b16 %v574
    %v1953 = vunpack.c.l.b16 %v575
    %v1954 = vunpack.c.h.b16 %v575
    %v1955 = vunpack.c.l.b16 %v576
    %v1956 = vunpack.c.h.b16 %v576
    %v1957 = vunpack.c.l.b16 %v577
    %v1958 = vunpack.c.h.b16 %v577
    %v1959 = vunpack.c.l.b16 %v578
    %v1960 = vunpack.c.h.b16 %v578
    %v1961 = vunpack.c.l.b16 %v579
    %v1962 = vunpack.c.h.b16 %v579
    %v1963 = vunpack.c.l.b16 %v580
    %v1964 = vunpack.c.h.b16 %v580
    %v1965 = vunpack.c.l.b16 %v581
    %v1966 = vunpack.c.h.b16 %v581
    %v1967 = vunpack.c.l.b16 %v582
    %v1968 = vunpack.c.h.b16 %v582
    %v1969 = vunpack.c.l.b16 %v583
    %v1970 = vunpack.c.h.b16 %v583
    %v1971 = vunpack.c.l.b16 %v584
    %v1972 = vunpack.c.h.b16 %v584
    %v1973 = vunpack.c.l.b16 %v585
    %v1974 = vunpack.c.h.b16 %v585
    %v1975 = vunpack.c.l.b16 %v586
    %v1976 = vunpack.c.h.b16 %v586
    %v1977 = vunpack.c.l.b16 %v587
    %v1978 = vunpack.c.h.b16 %v587
    %v1979 = vunpack.c.l.b16 %v588
    %v1980 = vunpack.c.h.b16 %v588
    %v1981 = vunpack.c.l.b16 %v589
    %v1982 = vunpack.c.h.b16 %v589
    %v1983 = vunpack.c.l.b16 %v590
    %v1984 = vunpack.c.h.b16 %v590
    %v1985 = vunpack.c.l.b16 %v591
    %v1986 = vunpack.c.h.b16 %v591
    %v1987 = vunpack.c.l.b16 %v592
    %v1988 = vunpack.c.h.b16 %v592
    %v1989 = vunpack.c.l.b16 %v593
    %v1990 = vunpack.c.h.b16 %v593
    %v1991 = vunpack.c.l.b16 %v594
    %v1992 = vunpack.c.h.b16 %v594
    %v1993 = vunpack.c.l.b16 %v595
    %v1994 = vunpack.c.h.b16 %v595
    %v1995 = vunpack.c.l.b16 %v596
    %v1996 = vunpack.c.h.b16 %v596
    %v1997 = vunpack.c.l.b16 %v597
    %v1998 = vunpack.c.h.b16 %v597
    %v1999 = vunpack.c.l.b16 %v598
    %v2000 = vunpack.c.h.b16 %v598
    %v2001 = vunpack.c.l.b16 %v599
    %v2002 = vunpack.c.h.b16 %v599
    %v2003 = vunpack.c.l.b16 %v600
    %v2004 = vunpack.c.h.b16 %v600
    %v2005 = vunpack.c.l.b16 %v601
    %v2006 = vunpack.c.h.b16 %v601
    %v2007 = vunpack.c.l.b16 %v602
    %v2008 = vunpack.c.h.b16 %v602
    %v2009 = vunpack.c.l.b16 %v603
    %v2010 = vunpack.c.h.b16 %v603
    %v2011 = vunpack.c.l.b16 %v604
    %v2012 = vunpack.c.h.b16 %v604
    %v2013 = vunpack.c.l.b16 %v605
    %v2014 = vunpack.c.h.b16 %v605
    %v2015 = vunpack.c.l.b16 %v606
    %v2016 = vunpack.c.h.b16 %v606
    %v2017 = vunpack.c.l.b16 %v607
    %v2018 = vunpack.c.h.b16 %v607
    %v2019 = vunpack.c.l.b16 %v608
    %v2020 = vunpack.c.h.b16 %v608
    %v2021 = vunpack.c.l.b16 %v609
    %v2022 = vunpack.c.h.b16 %v609
    %v2023 = vunpack.c.l.b16 %v610
    %v2024 = vunpack.c.h.b16 %v610
    %v2025 = vunpack.c.l.b16 %v611
    %v2026 = vunpack.c.h.b16 %v611
    %v2027 = vunpack.c.l.b16 %v612
    %v2028 = vunpack.c.h.b16 %v612
    %v2029 = vunpack.c.l.b16 %v613
    %v2030 = vunpack.c.h.b16 %v613
    %v2031 = vunpack.c.l.b16 %v614
    %v2032 = vunpack.c.h.b16 %v614
    %v2033 = vunpack.c.l.b16 %v615
    %v2034 = vunpack.c.h.b16 %v615
    %v2035 = vunpack.c.l.b16 %v616
    %v2036 = vunpack.c.h.b16 %v616
    %v2037 = vunpack.c.l.b16 %v617
    %v2038 = vunpack.c.h.b16 %v617
    %v2039 = vunpack.c.l.b16 %v618
    %v2040 = vunpack.c.h.b16 %v618
    %v2041 = vunpack.c.l.b16 %v619
    %v2042 = vunpack.c.h.b16 %v619
    %v2043 = vunpack.c.l.b16 %v620
    %v2044 = vunpack.c.h.b16 %v620
    %v2045 = vunpack.c.l.b16 %v621
    %v2046 = vunpack.c.h.b16 %v621
    %v2047 = vunpack.c.l.b16 %v622
    %v2048 = vunpack.c.h.b16 %v622
    %v2049 = vunpack.c.l.b16 %v623
    %v2050 = vunpack.c.h.b16 %v623
    %v2051 = vunpack.c.l.b16 %v624
    %v2052 = vunpack.c.h.b16 %v624
    %v2053 = vunpack.c.l.b16 %v625
    %v2054 = vunpack.c.h.b16 %v625
    %v2055 = vunpack.c.l.b16 %v626
    %v2056 = vunpack.c.h.b16 %v626
    %v2057 = vunpack.c.l.b16 %v627
    %v2058 = vunpack.c.h.b16 %v627
    %v2059 = vunpack.c.l.b16 %v628
    %v2060 = vunpack.c.h.b16 %v628
    %v2061 = vunpack.c.l.b16 %v629
    %v2062 = vunpack.c.h.b16 %v629
    %v2063 = vunpack.c.l.b16 %v630
    %v2064 = vunpack.c.h.b16 %v630
    %v2065 = vunpack.c.l.b16 %v631
    %v2066 = vunpack.c.h.b16 %v631
    %v2067 = vunpack.c.l.b16 %v632
    %v2068 = vunpack.c.h.b16 %v632
    %v2069 = vunpack.c.l.b16 %v633
    %v2070 = vunpack.c.h.b16 %v633
    %v2071 = vunpack.c.l.b16 %v634
    %v2072 = vunpack.c.h.b16 %v634
    %v2073 = vunpack.c.l.b16 %v635
    %v2074 = vunpack.c.h.b16 %v635
    %v2075 = vunpack.c.l.b16 %v636
    %v2076 = vunpack.c.h.b16 %v636
    %v2077 = vunpack.c.l.b16 %v637
    %v2078 = vunpack.c.h.b16 %v637
    %v2079 = vunpack.c.l.b16 %v638
    %v2080 = vunpack.c.h.b16 %v638
    %v2081 = vunpack.c.l.b16 %v639
    %v2082 = vunpack.c.h.b16 %v639
    %v2083 = vunpack.c.l.b16 %v640
    %v2084 = vunpack.c.h.b16 %v640
    %v2085 = vunpack.c.l.b16 %v641
    %v2086 = vunpack.c.h.b16 %v641
    %v2087 = vunpack.c.l.b16 %v642
    %v2088 = vunpack.c.h.b16 %v642
    %v2089 = vunpack.c.l.b16 %v643
    %v2090 = vunpack.c.h.b16 %v643
    %v2091 = vunpack.c.l.b16 %v644
    %v2092 = vunpack.c.h.b16 %v644
    %v2093 = vunpack.c.l.b16 %v645
    %v2094 = vunpack.c.h.b16 %v645
    %v2095 = vunpack.c.l.b16 %v646
    %v2096 = vunpack.c.h.b16 %v646
    %v2097 = vunpack.c.l.b16 %v647
    %v2098 = vunpack.c.h.b16 %v647
    %v2099 = vunpack.c.l.b16 %v648
    %v2100 = vunpack.c.h.b16 %v648
    %v2101 = vunpack.c.l.b16 %v649
    %v2102 = vunpack.c.h.b16 %v649
    %v2103 = vunpack.c.l.b16 %v650
    %v2104 = vunpack.c.h.b16 %v650
    %v2105 = vunpack.c.l.b16 %v651
    %v2106 = vunpack.c.h.b16 %v651
    %v2107 = vunpack.c.l.b16 %v652
    %v2108 = vunpack.c.h.b16 %v652
    %v2109 = vunpack.c.l.b16 %v653
    %v2110 = vunpack.c.h.b16 %v653
    %v2111 = vunpack.c.l.b16 %v654
    %v2112 = vunpack.c.h.b16 %v654
    %v2113 = vunpack.c.l.b16 %v655
    %v2114 = vunpack.c.h.b16 %v655
    %v2115 = vunpack.c.l.b16 %v656
    %v2116 = vunpack.c.h.b16 %v656
    %v2117 = vunpack.c.l.b16 %v657
    %v2118 = vunpack.c.h.b16 %v657
    %v2119 = vunpack.c.l.b16 %v658
    %v2120 = vunpack.c.h.b16 %v658
    %v2121 = vunpack.c.l.b16 %v659
    %v2122 = vunpack.c.h.b16 %v659
    %v2123 = vunpack.c.l.b16 %v660
    %v2124 = vunpack.c.h.b16 %v660
    %v2125 = vunpack.c.l.b16 %v661
    %v2126 = vunpack.c.h.b16 %v661
    %v2127 = vunpack.c.l.b16 %v662
    %v2128 = vunpack.c.h.b16 %v662
    %v2129 = vunpack.c.l.b16 %v663
    %v2130 = vunpack.c.h.b16 %v663
    %v2131 = vunpack.c.l.b16 %v664
    %v2132 = vunpack.c.h.b16 %v664
    %v2133 = vunpack.c.l.b16 %v665
    %v2134 = vunpack.c.h.b16 %v665
    %v2135 = vunpack.c.l.b16 %v666
    %v2136 = vunpack.c.h.b16 %v666
    %v2137 = vunpack.c.l.b16 %v667
    %v2138 = vunpack.c.h.b16 %v667
    %v2139 = vunpack.c.l.b16 %v668
    %v2140 = vunpack.c.h.b16 %v668
    %v2141 = vunpack.c.l.b16 %v669
    %v2142 = vunpack.c.h.b16 %v669
    %v2143 = vunpack.c.l.b16 %v670
    %v2144 = vunpack.c.h.b16 %v670
    %v2145 = vunpack.c.l.b16 %v671
    %v2146 = vunpack.c.h.b16 %v671
    %v2147 = vunpack.c.l.b16 %v672
    %v2148 = vunpack.c.h.b16 %v672
    %v2149 = vunpack.c.l.b16 %v673
    %v2150 = vunpack.c.h.b16 %v673
    %v2151 = vunpack.c.l.b16 %v674
    %v2152 = vunpack.c.h.b16 %v674
    %v2153 = vunpack.c.l.b16 %v675
    %v2154 = vunpack.c.h.b16 %v675
    %v2155 = vunpack.c.l.b16 %v676
    %v2156 = vunpack.c.h.b16 %v676
    %v2157 = vunpack.c.l.b16 %v677
    %v2158 = vunpack.c.h.b16 %v677
    %v2159 = vunpack.c.l.b16 %v678
    %v2160 = vunpack.c.h.b16 %v678
    %v2161 = vunpack.c.l.b16 %v679
    %v2162 = vunpack.c.h.b16 %v679
    %v2163 = vunpack.c.l.b16 %v680
    %v2164 = vunpack.c.h.b16 %v680
    %v2165 = vunpack.c.l.b16 %v681
    %v2166 = vunpack.c.h.b16 %v681
    %v2167 = vunpack.c.l.b16 %v682
    %v2168 = vunpack.c.h.b16 %v682
    %v2169 = vunpack.c.l.b16 %v683
    %v2170 = vunpack.c.h.b16 %v683
    %v2171 = vunpack.c.l.b16 %v684
    %v2172 = vunpack.c.h.b16 %v684
    %v2173 = vunpack.c.l.b16 %v685
    %v2174 = vunpack.c.h.b16 %v685
    %v2175 = vunpack.c.l.b16 %v686
    %v2176 = vunpack.c.h.b16 %v686
    %v2177 = vunpack.c.l.b16 %v687
    %v2178 = vunpack.c.h.b16 %v687
    %v2179 = vunpack.c.l.b16 %v688
    %v2180 = vunpack.c.h.b16 %v688
    %v2181 = vunpack.c.l.b16 %v689
    %v2182 = vunpack.c.h.b16 %v689
    %v2183 = vunpack.c.l.b16 %v690
    %v2184 = vunpack.c.h.b16 %v690
    %v2185 = vunpack.c.l.b16 %v691
    %v2186 = vunpack.c.h.b16 %v691
    %v2187 = vunpack.c.l.b16 %v692
    %v2188 = vunpack.c.h.b16 %v692
    %v2189 = vunpack.c.l.b16 %v693
    %v2190 = vunpack.c.h.b16 %v693
    %v2191 = vunpack.c.l.b16 %v694
    %v2192 = vunpack.c.h.b16 %v694
    %v2193 = vunpack.c.l.b16 %v695
    %v2194 = vunpack.c.h.b16 %v695
    %v2195 = vunpack.c.l.b16 %v696
    %v2196 = vunpack.c.h.b16 %v696
    %v2197 = vunpack.c.l.b16 %v697
    %v2198 = vunpack.c.h.b16 %v697
    %v2199 = vunpack.c.l.b16 %v698
    %v2200 = vunpack.c.h.b16 %v698
    %v2201 = vunpack.c.l.b16 %v699
    %v2202 = vunpack.c.h.b16 %v699
    %v2203 = vunpack.c.l.b16 %v700
    %v2204 = vunpack.c.h.b16 %v700
    %v2205 = vunpack.c.l.b16 %v701
    %v2206 = vunpack.c.h.b16 %v701
    %v2207 = vunpack.c.l.b16 %v702
    %v2208 = vunpack.c.h.b16 %v702
    %v2209 = vunpack.c.l.b16 %v703
    %v2210 = vunpack.c.h.b16 %v703
    %v2211 = vunpack.c.l.b16 %v704
    %v2212 = vunpack.c.h.b16 %v704
    %v2213 = vunpack.c.l.b16 %v705
    %v2214 = vunpack.c.h.b16 %v705
    %v2215 = vunpack.c.l.b16 %v706
    %v2216 = vunpack.c.h.b16 %v706
    %v2217 = vunpack.c.l.b16 %v707
    %v2218 = vunpack.c.h.b16 %v707
    %v2219 = vunpack.c.l.b16 %v708
    %v2220 = vunpack.c.h.b16 %v708
    %v2221 = vunpack.c.l.b16 %v709
    %v2222 = vunpack.c.h.b16 %v709
    %v2223 = vunpack.c.l.b16 %v710
    %v2224 = vunpack.c.h.b16 %v710
    %v2225 = vunpack.c.l.b16 %v711
    %v2226 = vunpack.c.h.b16 %v711
    %v2227 = vunpack.c.l.b16 %v712
    %v2228 = vunpack.c.h.b16 %v712
    %v2229 = vunpack.c.l.b16 %v713
    %v2230 = vunpack.c.h.b16 %v713
    %v2231 = vunpack.c.l.b16 %v714
    %v2232 = vunpack.c.h.b16 %v714
    %v2233 = vunpack.c.l.b16 %v715
    %v2234 = vunpack.c.h.b16 %v715
    %v2235 = vunpack.c.l.b16 %v716
    %v2236 = vunpack.c.h.b16 %v716
    %v2237 = vunpack.c.l.b16 %v717
    %v2238 = vunpack.c.h.b16 %v717
    %v2239 = vunpack.c.l.b16 %v718
    %v2240 = vunpack.c.h.b16 %v718
    %v2241 = vunpack.c.l.b16 %v719
    %v2242 = vunpack.c.h.b16 %v719
    %v2243 = vunpack.c.l.b16 %v720
    %v2244 = vunpack.c.h.b16 %v720
    %v2245 = vunpack.c.l.b16 %v721
    %v2246 = vunpack.c.h.b16 %v721
    %v2247 = vunpack.c.l.b16 %v722
    %v2248 = vunpack.c.h.b16 %v722
    %v2249 = vunpack.c.l.b16 %v723
    %v2250 = vunpack.c.h.b16 %v723
    %v2251 = vunpack.c.l.b16 %v724
    %v2252 = vunpack.c.h.b16 %v724
    %v2253 = vunpack.c.l.b16 %v725
    %v2254 = vunpack.c.h.b16 %v725
    %v2255 = vunpack.c.l.b16 %v726
    %v2256 = vunpack.c.h.b16 %v726
    %v2257 = vunpack.c.l.b16 %v727
    %v2258 = vunpack.c.h.b16 %v727
    %v2259 = vunpack.c.l.b16 %v728
    %v2260 = vunpack.c.h.b16 %v728
    %v2261 = vunpack.c.l.b16 %v729
    %v2262 = vunpack.c.h.b16 %v729
    %v2263 = vunpack.c.l.b16 %v730
    %v2264 = vunpack.c.h.b16 %v730
    %v2265 = vunpack.c.l.b16 %v731
    %v2266 = vunpack.c.h.b16 %v731
    %v2267 = vunpack.c.l.b16 %v732
    %v2268 = vunpack.c.h.b16 %v732
    %v2269 = vunpack.c.l.b16 %v733
    %v2270 = vunpack.c.h.b16 %v733
    %v2271 = vunpack.c.l.b16 %v734
    %v2272 = vunpack.c.h.b16 %v734
    %v2273 = vunpack.c.l.b16 %v735
    %v2274 = vunpack.c.h.b16 %v735
    %v2275 = vunpack.c.l.b16 %v736
    %v2276 = vunpack.c.h.b16 %v736
    %v2277 = vunpack.c.l.b16 %v737
    %v2278 = vunpack.c.h.b16 %v737
    %v2279 = vunpack.c.l.b16 %v738
    %v2280 = vunpack.c.h.b16 %v738
    %v2281 = vunpack.c.l.b16 %v739
    %v2282 = vunpack.c.h.b16 %v739
    %v2283 = vunpack.c.l.b16 %v740
    %v2284 = vunpack.c.h.b16 %v740
    %v2285 = vunpack.c.l.b16 %v741
    %v2286 = vunpack.c.h.b16 %v741
    %v2287 = vunpack.c.l.b16 %v742
    %v2288 = vunpack.c.h.b16 %v742
    %v2289 = vunpack.c.l.b16 %v743
    %v2290 = vunpack.c.h.b16 %v743
    %v2291 = vunpack.c.l.b16 %v744
    %v2292 = vunpack.c.h.b16 %v744
    %v2293 = vpack.c.b16 %v1271, %v1269
    %v2294 = vpack.c.b16 %v1272, %v1270
    %v2295 = vpack.c.b16 %v1275, %v1273
    %v2296 = vpack.c.b16 %v1276, %v1274
    %v2297 = vpack.c.b16 %v1279, %v1277
    %v2298 = vpack.c.b16 %v1280, %v1278
    %v2299 = vpack.c.b16 %v1283, %v1281
    %v2300 = vpack.c.b16 %v1284, %v1282
    %v2301 = vpack.c.b16 %v1287, %v1285
    %v2302 = vpack.c.b16 %v1288, %v1286
    %v2303 = vpack.c.b16 %v1291, %v1289
    %v2304 = vpack.c.b16 %v1292, %v1290
    %v2305 = vpack.c.b16 %v1295, %v1293
    %v2306 = vpack.c.b16 %v1296, %v1294
    %v2307 = vpack.c.b16 %v1299, %v1297
    %v2308 = vpack.c.b16 %v1300, %v1298
    %v2309 = vpack.c.b16 %v1303, %v1301
    %v2310 = vpack.c.b16 %v1304, %v1302
    %v2311 = vpack.c.b16 %v1307, %v1305
    %v2312 = vpack.c.b16 %v1308, %v1306
    %v2313 = vpack.c.b16 %v1311, %v1309
    %v2314 = vpack.c.b16 %v1312, %v1310
    %v2315 = vpack.c.b16 %v1315, %v1313
    %v2316 = vpack.c.b16 %v1316, %v1314
    %v2317 = vpack.c.b16 %v1319, %v1317
    %v2318 = vpack.c.b16 %v1320, %v1318
    %v2319 = vpack.c.b16 %v1323, %v1321
    %v2320 = vpack.c.b16 %v1324, %v1322
    %v2321 = vpack.c.b16 %v1327, %v1325
    %v2322 = vpack.c.b16 %v1328, %v1326
    %v2323 = vpack.c.b16 %v1331, %v1329
    %v2324 = vpack.c.b16 %v1332, %v1330
    %v2325 = vpack.c.b16 %v1335, %v1333
    %v2326 = vpack.c.b16 %v1336, %v1334
    %v2327 = vpack.c.b16 %v1339, %v1337
    %v2328 = vpack.c.b16 %v1340, %v1338
    %v2329 = vpack.c.b16 %v1343, %v1341
    %v2330 = vpack.c.b16 %v1344, %v1342
    %v2331 = vpack.c.b16 %v1347, %v1345
    %v2332 = vpack.c.b16 %v1348, %v1346
    %v2333 = vpack.c.b16 %v1351, %v1349
    %v2334 = vpack.c.b16 %v1352, %v1350
    %v2335 = vpack.c.b16 %v1355, %v1353
    %v2336 = vpack.c.b16 %v1356, %v1354
    %v2337 = vpack.c.b16 %v1359, %v1357
    %v2338 = vpack.c.b16 %v1360, %v1358
    %v2339 = vpack.c.b16 %v1363, %v1361
    %v2340 = vpack.c.b16 %v1364, %v1362
    %v2341 = vpack.c.b16 %v1367, %v1365
    %v2342 = vpack.c.b16 %v1368, %v1366
    %v2343 = vpack.c.b16 %v1371, %v1369
    %v2344 = vpack.c.b16 %v1372, %v1370
    %v2345 = vpack.c.b16 %v1375, %v1373
    %v2346 = vpack.c.b16 %v1376, %v1374
    %v2347 = vpack.c.b16 %v1379, %v1377
    %v2348 = vpack.c.b16 %v1380, %v1378
    %v2349 = vpack.c.b16 %v1383, %v1381
    %v2350 = vpack.c.b16 %v1384, %v1382
    %v2351 = vpack.c.b16 %v1387, %v1385
    %v2352 = vpack.c.b16 %v1388, %v1386
    %v2353 = vpack.c.b16 %v1391, %v1389
    %v2354 = vpack.c.b16 %v1392, %v1390
    %v2355 = vpack.c.b16 %v1395, %v1393
    %v2356 = vpack.c.b16 %v1396, %v1394
    %v2357 = vpack.c.b16 %v1399, %v1397
    %v2358 = vpack.c.b16 %v1400, %v1398
    %v2359 = vpack.c.b16 %v1403, %v1401
    %v2360 = vpack.c.b16 %v1404, %v1402
    %v2361 = vpack.c.b16 %v1407, %v1405
    %v2362 = vpack.c.b16 %v1408, %v1406
    %v2363 = vpack.c.b16 %v1411, %v1409
    %v2364 = vpack.c.b16 %v1412, %v1410
    %v2365 = vpack.c.b16 %v1415, %v1413
    %v2366 = vpack.c.b16 %v1416, %v1414
    %v2367 = vpack.c.b16 %v1419, %v1417
    %v2368 = vpack.c.b16 %v1420, %v1418
    %v2369 = vpack.c.b16 %v1423, %v1421
    %v2370 = vpack.c.b16 %v1424, %v1422
    %v2371 = vpack.c.b16 %v1427, %v1425
    %v2372 = vpack.c.b16 %v1428, %v1426
    %v2373 = vpack.c.b16 %v1431, %v1429
    %v2374 = vpack.c.b16 %v1432, %v1430
    %v2375 = vpack.c.b16 %v1435, %v1433
    %v2376 = vpack.c.b16 %v1436, %v1434
    %v2377 = vpack.c.b16 %v1439, %v1437
    %v2378 = vpack.c.b16 %v1440, %v1438
    %v2379 = vpack.c.b16 %v1443, %v1441
    %v2380 = vpack.c.b16 %v1444, %v1442
    %v2381 = vpack.c.b16 %v1447, %v1445
    %v2382 = vpack.c.b16 %v1448, %v1446
    %v2383 = vpack.c.b16 %v1451, %v1449
    %v2384 = vpack.c.b16 %v1452, %v1450
    %v2385 = vpack.c.b16 %v1455, %v1453
    %v2386 = vpack.c.b16 %v1456, %v1454
    %v2387 = vpack.c.b16 %v1459, %v1457
    %v2388 = vpack.c.b16 %v1460, %v1458
    %v2389 = vpack.c.b16 %v1463, %v1461
    %v2390 = vpack.c.b16 %v1464, %v1462
    %v2391 = vpack.c.b16 %v1467, %v1465
    %v2392 = vpack.c.b16 %v1468, %v1466
    %v2393 = vpack.c.b16 %v1471, %v1469
    %v2394 = vpack.c.b16 %v1472, %v1470
    %v2395 = vpack.c.b16 %v1475, %v1473
    %v2396 = vpack.c.b16 %v1476, %v1474
    %v2397 = vpack.c.b16 %v1479, %v1477
    %v2398 = vpack.c.b16 %v1480, %v1478
    %v2399 = vpack.c.b16 %v1483, %v1481
    %v2400 = vpack.c.b16 %v1484, %v1482
    %v2401 = vpack.c.b16 %v1487, %v1485
    %v2402 = vpack.c.b16 %v1488, %v1486
    %v2403 = vpack.c.b16 %v1491, %v1489
    %v2404 = vpack.c.b16 %v1492, %v1490
    %v2405 = vpack.c.b16 %v1495, %v1493
    %v2406 = vpack.c.b16 %v1496, %v1494
    %v2407 = vpack.c.b16 %v1499, %v1497
    %v2408 = vpack.c.b16 %v1500, %v1498
    %v2409 = vpack.c.b16 %v1503, %v1501
    %v2410 = vpack.c.b16 %v1504, %v1502
    %v2411 = vpack.c.b16 %v1507, %v1505
    %v2412 = vpack.c.b16 %v1508, %v1506
    %v2413 = vpack.c.b16 %v1511, %v1509
    %v2414 = vpack.c.b16 %v1512, %v1510
    %v2415 = vpack.c.b16 %v1515, %v1513
    %v2416 = vpack.c.b16 %v1516, %v1514
    %v2417 = vpack.c.b16 %v1519, %v1517
    %v2418 = vpack.c.b16 %v1520, %v1518
    %v2419 = vpack.c.b16 %v1523, %v1521
    %v2420 = vpack.c.b16 %v1524, %v1522
    %v2421 = vpack.c.b16 %v1527, %v1525
    %v2422 = vpack.c.b16 %v1528, %v1526
    %v2423 = vpack.c.b16 %v1531, %v1529
    %v2424 = vpack.c.b16 %v1532, %v1530
    %v2425 = vpack.c.b16 %v1535, %v1533
    %v2426 = vpack.c.b16 %v1536, %v1534
    %v2427 = vpack.c.b16 %v1539, %v1537
    %v2428 = vpack.c.b16 %v1540, %v1538
    %v2429 = vpack.c.b16 %v1543, %v1541
    %v2430 = vpack.c.b16 %v1544, %v1542
    %v2431 = vpack.c.b16 %v1547, %v1545
    %v2432 = vpack.c.b16 %v1548, %v1546
    %v2433 = vpack.c.b16 %v1551, %v1549
    %v2434 = vpack.c.b16 %v1552, %v1550
    %v2435 = vpack.c.b16 %v1555, %v1553
    %v2436 = vpack.c.b16 %v1556, %v1554
    %v2437 = vpack.c.b16 %v1559, %v1557
    %v2438 = vpack.c.b16 %v1560, %v1558
    %v2439 = vpack.c.b16 %v1563, %v1561
    %v2440 = vpack.c.b16 %v1564, %v1562
    %v2441 = vpack.c.b16 %v1567, %v1565
    %v2442 = vpack.c.b16 %v1568, %v1566
    %v2443 = vpack.c.b16 %v1571, %v1569
    %v2444 = vpack.c.b16 %v1572, %v1570
    %v2445 = vpack.c.b16 %v1575, %v1573
    %v2446 = vpack.c.b16 %v1576, %v1574
    %v2447 = vpack.c.b16 %v1579, %v1577
    %v2448 = vpack.c.b16 %v1580, %v1578
    %v2449 = vpack.c.b16 %v1583, %v1581
    %v2450 = vpack.c.b16 %v1584, %v1582
    %v2451 = vpack.c.b16 %v1587, %v1585
    %v2452 = vpack.c.b16 %v1588, %v1586
    %v2453 = vpack.c.b16 %v1591, %v1589
    %v2454 = vpack.c.b16 %v1592, %v1590
    %v2455 = vpack.c.b16 %v1595, %v1593
    %v2456 = vpack.c.b16 %v1596, %v1594
    %v2457 = vpack.c.b16 %v1599, %v1597
    %v2458 = vpack.c.b16 %v1600, %v1598
    %v2459 = vpack.c.b16 %v1603, %v1601
    %v2460 = vpack.c.b16 %v1604, %v1602
    %v2461 = vpack.c.b16 %v1607, %v1605
    %v2462 = vpack.c.b16 %v1608, %v1606
    %v2463 = vpack.c.b16 %v1611, %v1609
    %v2464 = vpack.c.b16 %v1612, %v1610
    %v2465 = vpack.c.b16 %v1615, %v1613
    %v2466 = vpack.c.b16 %v1616, %v1614
    %v2467 = vpack.c.b16 %v1619, %v1617
    %v2468 = vpack.c.b16 %v1620, %v1618
    %v2469 = vpack.c.b16 %v1623, %v1621
    %v2470 = vpack.c.b16 %v1624, %v1622
    %v2471 = vpack.c.b16 %v1627, %v1625
    %v2472 = vpack.c.b16 %v1628, %v1626
    %v2473 = vpack.c.b16 %v1631, %v1629
    %v2474 = vpack.c.b16 %v1632, %v1630
    %v2475 = vpack.c.b16 %v1635, %v1633
    %v2476 = vpack.c.b16 %v1636, %v1634
    %v2477 = vpack.c.b16 %v1639, %v1637
    %v2478 = vpack.c.b16 %v1640, %v1638
    %v2479 = vpack.c.b16 %v1643, %v1641
    %v2480 = vpack.c.b16 %v1644, %v1642
    %v2481 = vpack.c.b16 %v1647, %v1645
    %v2482 = vpack.c.b16 %v1648, %v1646
    %v2483 = vpack.c.b16 %v1651, %v1649
    %v2484 = vpack.c.b16 %v1652, %v1650
    %v2485 = vpack.c.b16 %v1655, %v1653
    %v2486 = vpack.c.b16 %v1656, %v1654
    %v2487 = vpack.c.b16 %v1659, %v1657
    %v2488 = vpack.c.b16 %v1660, %v1658
    %v2489 = vpack.c.b16 %v1663, %v1661
    %v2490 = vpack.c.b16 %v1664, %v1662
    %v2491 = vpack.c.b16 %v1667, %v1665
    %v2492 = vpack.c.b16 %v1668, %v1666
    %v2493 = vpack.c.b16 %v1671, %v1669
    %v2494 = vpack.c.b16 %v1672, %v1670
    %v2495 = vpack.c.b16 %v1675, %v1673
    %v2496 = vpack.c.b16 %v1676, %v1674
    %v2497 = vpack.c.b16 %v1679, %v1677
    %v2498 = vpack.c.b16 %v1680, %v1678
    %v2499 = vpack.c.b16 %v1683, %v1681
    %v2500 = vpack.c.b16 %v1684, %v1682
    %v2501 = vpack.c.b16 %v1687, %v1685
    %v2502 = vpack.c.b16 %v1688, %v1686
    %v2503 = vpack.c.b16 %v1691, %v1689
    %v2504 = vpack.c.b16 %v1692, %v1690
    %v2505 = vpack.c.b16 %v1695, %v1693
    %v2506 = vpack.c.b16 %v1696, %v1694
    %v2507 = vpack.c.b16 %v1699, %v1697
    %v2508 = vpack.c.b16 %v1700, %v1698
    %v2509 = vpack.c.b16 %v1703, %v1701
    %v2510 = vpack.c.b16 %v1704, %v1702
    %v2511 = vpack.c.b16 %v1707, %v1705
    %v2512 = vpack.c.b16 %v1708, %v1706
    %v2513 = vpack.c.b16 %v1711, %v1709
    %v2514 = vpack.c.b16 %v1712, %v1710
    %v2515 = vpack.c.b16 %v1715, %v1713
    %v2516 = vpack.c.b16 %v1716, %v1714
    %v2517 = vpack.c.b16 %v1719, %v1717
    %v2518 = vpack.c.b16 %v1720, %v1718
    %v2519 = vpack.c.b16 %v1723, %v1721
    %v2520 = vpack.c.b16 %v1724, %v1722
    %v2521 = vpack.c.b16 %v1727, %v1725
    %v2522 = vpack.c.b16 %v1728, %v1726
    %v2523 = vpack.c.b16 %v1731, %v1729
    %v2524 = vpack.c.b16 %v1732, %v1730
    %v2525 = vpack.c.b16 %v1735, %v1733
    %v2526 = vpack.c.b16 %v1736, %v1734
    %v2527 = vpack.c.b16 %v1739, %v1737
    %v2528 = vpack.c.b16 %v1740, %v1738
    %v2529 = vpack.c.b16 %v1743, %v1741
    %v2530 = vpack.c.b16 %v1744, %v1742
    %v2531 = vpack.c.b16 %v1747, %v1745
    %v2532 = vpack.c.b16 %v1748, %v1746
    %v2533 = vpack.c.b16 %v1751, %v1749
    %v2534 = vpack.c.b16 %v1752, %v1750
    %v2535 = vpack.c.b16 %v1755, %v1753
    %v2536 = vpack.c.b16 %v1756, %v1754
    %v2537 = vpack.c.b16 %v1759, %v1757
    %v2538 = vpack.c.b16 %v1760, %v1758
    %v2539 = vpack.c.b16 %v1763, %v1761
    %v2540 = vpack.c.b16 %v1764, %v1762
    %v2541 = vpack.c.b16 %v1767, %v1765
    %v2542 = vpack.c.b16 %v1768, %v1766
    %v2543 = vpack.c.b16 %v1771, %v1769
    %v2544 = vpack.c.b16 %v1772, %v1770
    %v2545 = vpack.c.b16 %v1775, %v1773
    %v2546 = vpack.c.b16 %v1776, %v1774
    %v2547 = vpack.c.b16 %v1779, %v1777
    %v2548 = vpack.c.b16 %v1780, %v1778
    %v2549 = vpack.c.b16 %v1783, %v1781
    %v2550 = vpack.c.b16 %v1784, %v1782
    %v2551 = vpack.c.b16 %v1787, %v1785
    %v2552 = vpack.c.b16 %v1788, %v1786
    %v2553 = vpack.c.b16 %v1791, %v1789
    %v2554 = vpack.c.b16 %v1792, %v1790
    %v2555 = vpack.c.b16 %v1795, %v1793
    %v2556 = vpack.c.b16 %v1796, %v1794
    %v2557 = vpack.c.b16 %v1799, %v1797
    %v2558 = vpack.c.b16 %v1800, %v1798
    %v2559 = vpack.c.b16 %v1803, %v1801
    %v2560 = vpack.c.b16 %v1804, %v1802
    %v2561 = vpack.c.b16 %v1807, %v1805
    %v2562 = vpack.c.b16 %v1808, %v1806
    %v2563 = vpack.c.b16 %v1811, %v1809
    %v2564 = vpack.c.b16 %v1812, %v1810
    %v2565 = vpack.c.b16 %v1815, %v1813
    %v2566 = vpack.c.b16 %v1816, %v1814
    %v2567 = vpack.c.b16 %v1819, %v1817
    %v2568 = vpack.c.b16 %v1820, %v1818
    %v2569 = vpack.c.b16 %v1823, %v1821
    %v2570 = vpack.c.b16 %v1824, %v1822
    %v2571 = vpack.c.b16 %v1827, %v1825
    %v2572 = vpack.c.b16 %v1828, %v1826
    %v2573 = vpack.c.b16 %v1831, %v1829
    %v2574 = vpack.c.b16 %v1832, %v1830
    %v2575 = vpack.c.b16 %v1835, %v1833
    %v2576 = vpack.c.b16 %v1836, %v1834
    %v2577 = vpack.c.b16 %v1839, %v1837
    %v2578 = vpack.c.b16 %v1840, %v1838
    %v2579 = vpack.c.b16 %v1843, %v1841
    %v2580 = vpack.c.b16 %v1844, %v1842
    %v2581 = vpack.c.b16 %v1847, %v1845
    %v2582 = vpack.c.b16 %v1848, %v1846
    %v2583 = vpack.c.b16 %v1851, %v1849
    %v2584 = vpack.c.b16 %v1852, %v1850
    %v2585 = vpack.c.b16 %v1855, %v1853
    %v2586 = vpack.c.b16 %v1856, %v1854
    %v2587 = vpack.c.b16 %v1859, %v1857
    %v2588 = vpack.c.b16 %v1860, %v1858
    %v2589 = vpack.c.b16 %v1863, %v1861
    %v2590 = vpack.c.b16 %v1864, %v1862
    %v2591 = vpack.c.b16 %v1867, %v1865
    %v2592 = vpack.c.b16 %v1868, %v1866
    %v2593 = vpack.c.b16 %v1871, %v1869
    %v2594 = vpack.c.b16 %v1872, %v1870
    %v2595 = vpack.c.b16 %v1875, %v1873
    %v2596 = vpack.c.b16 %v1876, %v1874
    %v2597 = vpack.c.b16 %v1879, %v1877
    %v2598 = vpack.c.b16 %v1880, %v1878
    %v2599 = vpack.c.b16 %v1883, %v1881
    %v2600 = vpack.c.b16 %v1884, %v1882
    %v2601 = vpack.c.b16 %v1887, %v1885
    %v2602 = vpack.c.b16 %v1888, %v1886
    %v2603 = vpack.c.b16 %v1891, %v1889
    %v2604 = vpack.c.b16 %v1892, %v1890
    %v2605 = vpack.c.b16 %v1895, %v1893
    %v2606 = vpack.c.b16 %v1896, %v1894
    %v2607 = vpack.c.b16 %v1899, %v1897
    %v2608 = vpack.c.b16 %v1900, %v1898
    %v2609 = vpack.c.b16 %v1903, %v1901
    %v2610 = vpack.c.b16 %v1904, %v1902
    %v2611 = vpack.c.b16 %v1907, %v1905
    %v2612 = vpack.c.b16 %v1908, %v1906
    %v2613 = vpack.c.b16 %v1911, %v1909
    %v2614 = vpack.c.b16 %v1912, %v1910
    %v2615 = vpack.c.b16 %v1915, %v1913
    %v2616 = vpack.c.b16 %v1916, %v1914
    %v2617 = vpack.c.b16 %v1919, %v1917
    %v2618 = vpack.c.b16 %v1920, %v1918
    %v2619 = vpack.c.b16 %v1923, %v1921
    %v2620 = vpack.c.b16 %v1924, %v1922
    %v2621 = vpack.c.b16 %v1927, %v1925
    %v2622 = vpack.c.b16 %v1928, %v1926
    %v2623 = vpack.c.b16 %v1931, %v1929
    %v2624 = vpack.c.b16 %v1932, %v1930
    %v2625 = vpack.c.b16 %v1935, %v1933
    %v2626 = vpack.c.b16 %v1936, %v1934
    %v2627 = vpack.c.b16 %v1939, %v1937
    %v2628 = vpack.c.b16 %v1940, %v1938
    %v2629 = vpack.c.b16 %v1943, %v1941
    %v2630 = vpack.c.b16 %v1944, %v1942
    %v2631 = vpack.c.b16 %v1947, %v1945
    %v2632 = vpack.c.b16 %v1948, %v1946
    %v2633 = vpack.c.b16 %v1951, %v1949
    %v2634 = vpack.c.b16 %v1952, %v1950
    %v2635 = vpack.c.b16 %v1955, %v1953
    %v2636 = vpack.c.b16 %v1956, %v1954
    %v2637 = vpack.c.b16 %v1959, %v1957
    %v2638 = vpack.c.b16 %v1960, %v1958
    %v2639 = vpack.c.b16 %v1963, %v1961
    %v2640 = vpack.c.b16 %v1964, %v1962
    %v2641 = vpack.c.b16 %v1967, %v1965
    %v2642 = vpack.c.b16 %v1968, %v1966
    %v2643 = vpack.c.b16 %v1971, %v1969
    %v2644 = vpack.c.b16 %v1972, %v1970
    %v2645 = vpack.c.b16 %v1975, %v1973
    %v2646 = vpack.c.b16 %v1976, %v1974
    %v2647 = vpack.c.b16 %v1979, %v1977
    %v2648 = vpack.c.b16 %v1980, %v1978
    %v2649 = vpack.c.b16 %v1983, %v1981
    %v2650 = vpack.c.b16 %v1984, %v1982
    %v2651 = vpack.c.b16 %v1987, %v1985
    %v2652 = vpack.c.b16 %v1988, %v1986
    %v2653 = vpack.c.b16 %v1991, %v1989
    %v2654 = vpack.c.b16 %v1992, %v1990
    %v2655 = vpack.c.b16 %v1995, %v1993
    %v2656 = vpack.c.b16 %v1996, %v1994
    %v2657 = vpack.c.b16 %v1999, %v1997
    %v2658 = vpack.c.b16 %v2000, %v1998
    %v2659 = vpack.c.b16 %v2003, %v2001
    %v2660 = vpack.c.b16 %v2004, %v2002
    %v2661 = vpack.c.b16 %v2007, %v2005
    %v2662 = vpack.c.b16 %v2008, %v2006
    %v2663 = vpack.c.b16 %v2011, %v2009
    %v2664 = vpack.c.b16 %v2012, %v2010
    %v2665 = vpack.c.b16 %v2015, %v2013
    %v2666 = vpack.c.b16 %v2016, %v2014
    %v2667 = vpack.c.b16 %v2019, %v2017
    %v2668 = vpack.c.b16 %v2020, %v2018
    %v2669 = vpack.c.b16 %v2023, %v2021
    %v2670 = vpack.c.b16 %v2024, %v2022
    %v2671 = vpack.c.b16 %v2027, %v2025
    %v2672 = vpack.c.b16 %v2028, %v2026
    %v2673 = vpack.c.b16 %v2031, %v2029
    %v2674 = vpack.c.b16 %v2032, %v2030
    %v2675 = vpack.c.b16 %v2035, %v2033
    %v2676 = vpack.c.b16 %v2036, %v2034
    %v2677 = vpack.c.b16 %v2039, %v2037
    %v2678 = vpack.c.b16 %v2040, %v2038
    %v2679 = vpack.c.b16 %v2043, %v2041
    %v2680 = vpack.c.b16 %v2044, %v2042
    %v2681 = vpack.c.b16 %v2047, %v2045
    %v2682 = vpack.c.b16 %v2048, %v2046
    %v2683 = vpack.c.b16 %v2051, %v2049
    %v2684 = vpack.c.b16 %v2052, %v2050
    %v2685 = vpack.c.b16 %v2055, %v2053
    %v2686 = vpack.c.b16 %v2056, %v2054
    %v2687 = vpack.c.b16 %v2059, %v2057
    %v2688 = vpack.c.b16 %v2060, %v2058
    %v2689 = vpack.c.b16 %v2063, %v2061
    %v2690 = vpack.c.b16 %v2064, %v2062
    %v2691 = vpack.c.b16 %v2067, %v2065
    %v2692 = vpack.c.b16 %v2068, %v2066
    %v2693 = vpack.c.b16 %v2071, %v2069
    %v2694 = vpack.c.b16 %v2072, %v2070
    %v2695 = vpack.c.b16 %v2075, %v2073
    %v2696 = vpack.c.b16 %v2076, %v2074
    %v2697 = vpack.c.b16 %v2079, %v2077
    %v2698 = vpack.c.b16 %v2080, %v2078
    %v2699 = vpack.c.b16 %v2083, %v2081
    %v2700 = vpack.c.b16 %v2084, %v2082
    %v2701 = vpack.c.b16 %v2087, %v2085
    %v2702 = vpack.c.b16 %v2088, %v2086
    %v2703 = vpack.c.b16 %v2091, %v2089
    %v2704 = vpack.c.b16 %v2092, %v2090
    %v2705 = vpack.c.b16 %v2095, %v2093
    %v2706 = vpack.c.b16 %v2096, %v2094
    %v2707 = vpack.c.b16 %v2099, %v2097
    %v2708 = vpack.c.b16 %v2100, %v2098
    %v2709 = vpack.c.b16 %v2103, %v2101
    %v2710 = vpack.c.b16 %v2104, %v2102
    %v2711 = vpack.c.b16 %v2107, %v2105
    %v2712 = vpack.c.b16 %v2108, %v2106
    %v2713 = vpack.c.b16 %v2111, %v2109
    %v2714 = vpack.c.b16 %v2112, %v2110
    %v2715 = vpack.c.b16 %v2115, %v2113
    %v2716 = vpack.c.b16 %v2116, %v2114
    %v2717 = vpack.c.b16 %v2119, %v2117
    %v2718 = vpack.c.b16 %v2120, %v2118
    %v2719 = vpack.c.b16 %v2123, %v2121
    %v2720 = vpack.c.b16 %v2124, %v2122
    %v2721 = vpack.c.b16 %v2127, %v2125
    %v2722 = vpack.c.b16 %v2128, %v2126
    %v2723 = vpack.c.b16 %v2131, %v2129
    %v2724 = vpack.c.b16 %v2132, %v2130
    %v2725 = vpack.c.b16 %v2135, %v2133
    %v2726 = vpack.c.b16 %v2136, %v2134
    %v2727 = vpack.c.b16 %v2139, %v2137
    %v2728 = vpack.c.b16 %v2140, %v2138
    %v2729 = vpack.c.b16 %v2143, %v2141
    %v2730 = vpack.c.b16 %v2144, %v2142
    %v2731 = vpack.c.b16 %v2147, %v2145
    %v2732 = vpack.c.b16 %v2148, %v2146
    %v2733 = vpack.c.b16 %v2151, %v2149
    %v2734 = vpack.c.b16 %v2152, %v2150
    %v2735 = vpack.c.b16 %v2155, %v2153
    %v2736 = vpack.c.b16 %v2156, %v2154
    %v2737 = vpack.c.b16 %v2159, %v2157
    %v2738 = vpack.c.b16 %v2160, %v2158
    %v2739 = vpack.c.b16 %v2163, %v2161
    %v2740 = vpack.c.b16 %v2164, %v2162
    %v2741 = vpack.c.b16 %v2167, %v2165
    %v2742 = vpack.c.b16 %v2168, %v2166
    %v2743 = vpack.c.b16 %v2171, %v2169
    %v2744 = vpack.c.b16 %v2172, %v2170
    %v2745 = vpack.c.b16 %v2175, %v2173
    %v2746 = vpack.c.b16 %v2176, %v2174
    %v2747 = vpack.c.b16 %v2179, %v2177
    %v2748 = vpack.c.b16 %v2180, %v2178
    %v2749 = vpack.c.b16 %v2183, %v2181
    %v2750 = vpack.c.b16 %v2184, %v2182
    %v2751 = vpack.c.b16 %v2187, %v2185
    %v2752 = vpack.c.b16 %v2188, %v2186
    %v2753 = vpack.c.b16 %v2191, %v2189
    %v2754 = vpack.c.b16 %v2192, %v2190
    %v2755 = vpack.c.b16 %v2195, %v2193
    %v2756 = vpack.c.b16 %v2196, %v2194
    %v2757 = vpack.c.b16 %v2199, %v2197
    %v2758 = vpack.c.b16 %v2200, %v2198
    %v2759 = vpack.c.b16 %v2203, %v2201
    %v2760 = vpack.c.b16 %v2204, %v2202
    %v2761 = vpack.c.b16 %v2207, %v2205
    %v2762 = vpack.c.b16 %v2208, %v2206
    %v2763 = vpack.c.b16 %v2211, %v2209
    %v2764 = vpack.c.b16 %v2212, %v2210
    %v2765 = vpack.c.b16 %v2215, %v2213
    %v2766 = vpack.c.b16 %v2216, %v2214
    %v2767 = vpack.c.b16 %v2219, %v2217
    %v2768 = vpack.c.b16 %v2220, %v2218
    %v2769 = vpack.c.b16 %v2223, %v2221
    %v2770 = vpack.c.b16 %v2224, %v2222
    %v2771 = vpack.c.b16 %v2227, %v2225
    %v2772 = vpack.c.b16 %v2228, %v2226
    %v2773 = vpack.c.b16 %v2231, %v2229
    %v2774 = vpack.c.b16 %v2232, %v2230
    %v2775 = vpack.c.b16 %v2235, %v2233
    %v2776 = vpack.c.b16 %v2236, %v2234
    %v2777 = vpack.c.b16 %v2239, %v2237
    %v2778 = vpack.c.b16 %v2240, %v2238
    %v2779 = vpack.c.b16 %v2243, %v2241
    %v2780 = vpack.c.b16 %v2244, %v2242
    %v2781 = vpack.c.b16 %v2247, %v2245
    %v2782 = vpack.c.b16 %v2248, %v2246
    %v2783 = vpack.c.b16 %v2251, %v2249
    %v2784 = vpack.c.b16 %v2252, %v2250
    %v2785 = vpack.c.b16 %v2255, %v2253
    %v2786 = vpack.c.b16 %v2256, %v2254
    %v2787 = vpack.c.b16 %v2259, %v2257
    %v2788 = vpack.c.b16 %v2260, %v2258
    %v2789 = vpack.c.b16 %v2263, %v2261
    %v2790 = vpack.c.b16 %v2264, %v2262
    %v2791 = vpack.c.b16 %v2267, %v2265
    %v2792 = vpack.c.b16 %v2268, %v2266
    %v2793 = vpack.c.b16 %v2271, %v2269
    %v2794 = vpack.c.b16 %v2272, %v2270
    %v2795 = vpack.c.b16 %v2275, %v2273
    %v2796 = vpack.c.b16 %v2276, %v2274
    %v2797 = vpack.c.b16 %v2279, %v2277
    %v2798 = vpack.c.b16 %v2280, %v2278
    %v2799 = vpack.c.b16 %v2283, %v2281
    %v2800 = vpack.c.b16 %v2284, %v2282
    %v2801 = vpack.c.b16 %v2287, %v2285
    %v2802 = vpack.c.b16 %v2288, %v2286
    %v2803 = vpack.c.b16 %v2291, %v2289
    %v2804 = vpack.c.b16 %v2292, %v2290
    %3317 = vmatprep.subr.bf16.mxu0 %v2294
    %3318 = vmatpush1.bf16.msra.mxu0 %v2293
    %3319 = vmatprep.subr.bf16.mxu0 %v2296
    %3320 = vmatpush1.bf16.msra.mxu0 %v2295
    %3321 = vmatprep.subr.bf16.mxu0 %v2298
    %3322 = vmatpush1.bf16.msra.mxu0 %v2297
    %3323 = vmatprep.subr.bf16.mxu0 %v2300
    %3324 = vmatpush1.bf16.msra.mxu0 %v2299
    %3325 = vmatprep.subr.bf16.mxu0 %v2302
    %3326 = vmatpush1.bf16.msra.mxu0 %v2301
    %3327 = vmatprep.subr.bf16.mxu0 %v2304
    %3328 = vmatpush1.bf16.msra.mxu0 %v2303
    %3329 = vmatprep.subr.bf16.mxu0 %v2306
    %3330 = vmatpush1.bf16.msra.mxu0 %v2305
    %3331 = vmatprep.subr.bf16.mxu0 %v2308
    %3332 = vmatpush1.bf16.msra.mxu0 %v2307
    %3333 = vmatprep.subr.bf16.mxu0 %v2310
    %3334 = vmatpush1.bf16.msra.mxu0 %v2309
    %3335 = vmatprep.subr.bf16.mxu0 %v2312
    %3336 = vmatpush1.bf16.msra.mxu0 %v2311
    %3337 = vmatprep.subr.bf16.mxu0 %v2314
    %3338 = vmatpush1.bf16.msra.mxu0 %v2313
    %3339 = vmatprep.subr.bf16.mxu0 %v2316
    %3340 = vmatpush1.bf16.msra.mxu0 %v2315
    %3341 = vmatprep.subr.bf16.mxu0 %v2318
    %3342 = vmatpush1.bf16.msra.mxu0 %v2317
    %3343 = vmatprep.subr.bf16.mxu0 %v2320
    %3344 = vmatpush1.bf16.msra.mxu0 %v2319
    %3345 = vmatprep.subr.bf16.mxu0 %v2322
    %3346 = vmatpush1.bf16.msra.mxu0 %v2321
    %3347 = vmatprep.subr.bf16.mxu0 %v2324
    %3348 = vmatpush1.bf16.msra.mxu0 %v2323
    %3349 = vmatprep.mubr.bf16.mxu0 %v202
    %3350 = vmatmul.mubr.bf16.gmra.mrb[0].mxu0 %v201
    %v3351 = vpop.f32.mrb[0].mxu0
    %v3352 = vadd.f32 %v750, %v3351
    %v3353 = vpop.f32.mrb[0].mxu0
    %v3354 = vadd.f32 %v754, %v3353
    %v3355 = vpop.f32.mrb[0].mxu0
    %v3356 = vpop.f32.mrb[0].mxu0
    %3357 = vdwg.mxu0
    %3358 = vmatprep.subr.bf16.mxu0 %v2326
    %3359 = vmatpush1.bf16.msra.mxu0 %v2325
    %3360 = vmatprep.subr.bf16.mxu0 %v2328
    %3361 = vmatpush1.bf16.msra.mxu0 %v2327
    %3362 = vmatprep.subr.bf16.mxu0 %v2330
    %3363 = vmatpush1.bf16.msra.mxu0 %v2329
    %3364 = vmatprep.subr.bf16.mxu0 %v2332
    %3365 = vmatpush1.bf16.msra.mxu0 %v2331
    %3366 = vmatprep.subr.bf16.mxu0 %v2334
    %3367 = vmatpush1.bf16.msra.mxu0 %v2333
    %3368 = vmatprep.subr.bf16.mxu0 %v2336
    %3369 = vmatpush1.bf16.msra.mxu0 %v2335
    %3370 = vmatprep.subr.bf16.mxu0 %v2338
    %3371 = vmatpush1.bf16.msra.mxu0 %v2337
    %3372 = vmatprep.subr.bf16.mxu0 %v2340
    %3373 = vmatpush1.bf16.msra.mxu0 %v2339
    %3374 = vmatprep.subr.bf16.mxu0 %v2342
    %3375 = vmatpush1.bf16.msra.mxu0 %v2341
    %3376 = vmatprep.subr.bf16.mxu0 %v2344
    %3377 = vmatpush1.bf16.msra.mxu0 %v2343
    %3378 = vmatprep.subr.bf16.mxu0 %v2346
    %3379 = vmatpush1.bf16.msra.mxu0 %v2345
    %3380 = vmatprep.subr.bf16.mxu0 %v2348
    %3381 = vmatpush1.bf16.msra.mxu0 %v2347
    %3382 = vmatprep.subr.bf16.mxu0 %v2350
    %3383 = vmatpush1.bf16.msra.mxu0 %v2349
    %3384 = vmatprep.subr.bf16.mxu0 %v2352
    %3385 = vmatpush1.bf16.msra.mxu0 %v2351
    %3386 = vmatprep.subr.bf16.mxu0 %v2354
    %3387 = vmatpush1.bf16.msra.mxu0 %v2353
    %3388 = vmatprep.subr.bf16.mxu0 %v2356
    %3389 = vmatpush1.bf16.msra.mxu0 %v2355
    %3390 = vmatprep.mubr.bf16.mxu0 %v204
    %3391 = vmatmul.mubr.bf16.gmra.mrb[0].mxu0 %v203
    %v3392 = vpop.f32.mrb[0].mxu0
    %v3393 = vadd.f32 %v3352, %v3392
    %v3394 = vpop.f32.mrb[0].mxu0
    %v3395 = vadd.f32 %v3354, %v3394
    %v3396 = vpop.f32.mrb[0].mxu0
    %v3397 = vpop.f32.mrb[0].mxu0
    %3398 = vdwg.mxu0
    %3399 = vmatprep.subr.bf16.mxu0 %v2358
    %3400 = vmatpush1.bf16.msra.mxu0 %v2357
    %3401 = vmatprep.subr.bf16.mxu0 %v2360
    %3402 = vmatpush1.bf16.msra.mxu0 %v2359
    %3403 = vmatprep.subr.bf16.mxu0 %v2362
    %3404 = vmatpush1.bf16.msra.mxu0 %v2361
    %3405 = vmatprep.subr.bf16.mxu0 %v2364
    %3406 = vmatpush1.bf16.msra.mxu0 %v2363
    %3407 = vmatprep.subr.bf16.mxu0 %v2366
    %3408 = vmatpush1.bf16.msra.mxu0 %v2365
    %3409 = vmatprep.subr.bf16.mxu0 %v2368
    %3410 = vmatpush1.bf16.msra.mxu0 %v2367
    %3411 = vmatprep.subr.bf16.mxu0 %v2370
    %3412 = vmatpush1.bf16.msra.mxu0 %v2369
    %3413 = vmatprep.subr.bf16.mxu0 %v2372
    %3414 = vmatpush1.bf16.msra.mxu0 %v2371
    %3415 = vmatprep.subr.bf16.mxu0 %v2374
    %3416 = vmatpush1.bf16.msra.mxu0 %v2373
    %3417 = vmatprep.subr.bf16.mxu0 %v2376
    %3418 = vmatpush1.bf16.msra.mxu0 %v2375
    %3419 = vmatprep.subr.bf16.mxu0 %v2378
    %3420 = vmatpush1.bf16.msra.mxu0 %v2377
    %3421 = vmatprep.subr.bf16.mxu0 %v2380
    %3422 = vmatpush1.bf16.msra.mxu0 %v2379
    %3423 = vmatprep.subr.bf16.mxu0 %v2382
    %3424 = vmatpush1.bf16.msra.mxu0 %v2381
    %3425 = vmatprep.subr.bf16.mxu0 %v2384
    %3426 = vmatpush1.bf16.msra.mxu0 %v2383
    %3427 = vmatprep.subr.bf16.mxu0 %v2386
    %3428 = vmatpush1.bf16.msra.mxu0 %v2385
    %3429 = vmatprep.subr.bf16.mxu0 %v2388
    %3430 = vmatpush1.bf16.msra.mxu0 %v2387
    %3431 = vmatprep.mubr.bf16.mxu0 %v206
    %3432 = vmatmul.mubr.bf16.gmra.mrb[0].mxu0 %v205
    %v3433 = vpop.f32.mrb[0].mxu0
    %v3434 = vadd.f32 %v3393, %v3433
    %v3435 = vpop.f32.mrb[0].mxu0
    %v3436 = vadd.f32 %v3395, %v3435
    %v3437 = vpop.f32.mrb[0].mxu0
    %v3438 = vpop.f32.mrb[0].mxu0
    %3439 = vdwg.mxu0
    %3440 = vmatprep.subr.bf16.mxu0 %v2390
    %3441 = vmatpush1.bf16.msra.mxu0 %v2389
    %3442 = vmatprep.subr.bf16.mxu0 %v2392
    %3443 = vmatpush1.bf16.msra.mxu0 %v2391
    %3444 = vmatprep.subr.bf16.mxu0 %v2394
    %3445 = vmatpush1.bf16.msra.mxu0 %v2393
    %3446 = vmatprep.subr.bf16.mxu0 %v2396
    %3447 = vmatpush1.bf16.msra.mxu0 %v2395
    %3448 = vmatprep.subr.bf16.mxu0 %v2398
    %3449 = vmatpush1.bf16.msra.mxu0 %v2397
    %3450 = vmatprep.subr.bf16.mxu0 %v2400
    %3451 = vmatpush1.bf16.msra.mxu0 %v2399
    %3452 = vmatprep.subr.bf16.mxu0 %v2402
    %3453 = vmatpush1.bf16.msra.mxu0 %v2401
    %3454 = vmatprep.subr.bf16.mxu0 %v2404
    %3455 = vmatpush1.bf16.msra.mxu0 %v2403
    %3456 = vmatprep.subr.bf16.mxu0 %v2406
    %3457 = vmatpush1.bf16.msra.mxu0 %v2405
    %3458 = vmatprep.subr.bf16.mxu0 %v2408
    %3459 = vmatpush1.bf16.msra.mxu0 %v2407
    %3460 = vmatprep.subr.bf16.mxu0 %v2410
    %3461 = vmatpush1.bf16.msra.mxu0 %v2409
    %3462 = vmatprep.subr.bf16.mxu0 %v2412
    %3463 = vmatpush1.bf16.msra.mxu0 %v2411
    %3464 = vmatprep.subr.bf16.mxu0 %v2414
    %3465 = vmatpush1.bf16.msra.mxu0 %v2413
    %3466 = vmatprep.subr.bf16.mxu0 %v2416
    %3467 = vmatpush1.bf16.msra.mxu0 %v2415
    %3468 = vmatprep.subr.bf16.mxu0 %v2418
    %3469 = vmatpush1.bf16.msra.mxu0 %v2417
    %3470 = vmatprep.subr.bf16.mxu0 %v2420
    %3471 = vmatpush1.bf16.msra.mxu0 %v2419
    %3472 = vmatprep.mubr.bf16.mxu0 %v208
    %3473 = vmatmul.mubr.bf16.gmra.mrb[0].mxu0 %v207
    %v3474 = vpop.f32.mrb[0].mxu0
    %v3475 = vadd.f32 %v3434, %v3474
    %v3476 = vpop.f32.mrb[0].mxu0
    %v3477 = vadd.f32 %v3436, %v3476
    %v3478 = vpop.f32.mrb[0].mxu0
    %v3479 = vpop.f32.mrb[0].mxu0
    %3480 = vdwg.mxu0
    %3481 = vmatprep.subr.bf16.mxu0 %v2422
    %3482 = vmatpush1.bf16.msra.mxu0 %v2421
    %3483 = vmatprep.subr.bf16.mxu0 %v2424
    %3484 = vmatpush1.bf16.msra.mxu0 %v2423
    %3485 = vmatprep.subr.bf16.mxu0 %v2426
    %3486 = vmatpush1.bf16.msra.mxu0 %v2425
    %3487 = vmatprep.subr.bf16.mxu0 %v2428
    %3488 = vmatpush1.bf16.msra.mxu0 %v2427
    %3489 = vmatprep.subr.bf16.mxu0 %v2430
    %3490 = vmatpush1.bf16.msra.mxu0 %v2429
    %3491 = vmatprep.subr.bf16.mxu0 %v2432
    %3492 = vmatpush1.bf16.msra.mxu0 %v2431
    %3493 = vmatprep.subr.bf16.mxu0 %v2434
    %3494 = vmatpush1.bf16.msra.mxu0 %v2433
    %3495 = vmatprep.subr.bf16.mxu0 %v2436
    %3496 = vmatpush1.bf16.msra.mxu0 %v2435
    %3497 = vmatprep.subr.bf16.mxu0 %v2438
    %3498 = vmatpush1.bf16.msra.mxu0 %v2437
    %3499 = vmatprep.subr.bf16.mxu0 %v2440
    %3500 = vmatpush1.bf16.msra.mxu0 %v2439
    %3501 = vmatprep.subr.bf16.mxu0 %v2442
    %3502 = vmatpush1.bf16.msra.mxu0 %v2441
    %3503 = vmatprep.subr.bf16.mxu0 %v2444
    %3504 = vmatpush1.bf16.msra.mxu0 %v2443
    %3505 = vmatprep.subr.bf16.mxu0 %v2446
    %3506 = vmatpush1.bf16.msra.mxu0 %v2445
    %3507 = vmatprep.subr.bf16.mxu0 %v2448
    %3508 = vmatpush1.bf16.msra.mxu0 %v2447
    %3509 = vmatprep.subr.bf16.mxu0 %v2450
    %3510 = vmatpush1.bf16.msra.mxu0 %v2449
    %3511 = vmatprep.subr.bf16.mxu0 %v2452
    %3512 = vmatpush1.bf16.msra.mxu0 %v2451
    %3513 = vmatprep.mubr.bf16.mxu0 %v210
    %3514 = vmatmul.mubr.bf16.gmra.mrb[0].mxu0 %v209
    %v3515 = vpop.f32.mrb[0].mxu0
    %v3516 = vadd.f32 %v3475, %v3515
    %v3517 = vpop.f32.mrb[0].mxu0
    %v3518 = vadd.f32 %v3477, %v3517
    %v3519 = vpop.f32.mrb[0].mxu0
    %v3520 = vpop.f32.mrb[0].mxu0
    %3521 = vdwg.mxu0
    %3522 = vmatprep.subr.bf16.mxu0 %v2454
    %3523 = vmatpush1.bf16.msra.mxu0 %v2453
    %3524 = vmatprep.subr.bf16.mxu0 %v2456
    %3525 = vmatpush1.bf16.msra.mxu0 %v2455
    %3526 = vmatprep.subr.bf16.mxu0 %v2458
    %3527 = vmatpush1.bf16.msra.mxu0 %v2457
    %3528 = vmatprep.subr.bf16.mxu0 %v2460
    %3529 = vmatpush1.bf16.msra.mxu0 %v2459
    %3530 = vmatprep.subr.bf16.mxu0 %v2462
    %3531 = vmatpush1.bf16.msra.mxu0 %v2461
    %3532 = vmatprep.subr.bf16.mxu0 %v2464
    %3533 = vmatpush1.bf16.msra.mxu0 %v2463
    %3534 = vmatprep.subr.bf16.mxu0 %v2466
    %3535 = vmatpush1.bf16.msra.mxu0 %v2465
    %3536 = vmatprep.subr.bf16.mxu0 %v2468
    %3537 = vmatpush1.bf16.msra.mxu0 %v2467
    %3538 = vmatprep.subr.bf16.mxu0 %v2470
    %3539 = vmatpush1.bf16.msra.mxu0 %v2469
    %3540 = vmatprep.subr.bf16.mxu0 %v2472
    %3541 = vmatpush1.bf16.msra.mxu0 %v2471
    %3542 = vmatprep.subr.bf16.mxu0 %v2474
    %3543 = vmatpush1.bf16.msra.mxu0 %v2473
    %3544 = vmatprep.subr.bf16.mxu0 %v2476
    %3545 = vmatpush1.bf16.msra.mxu0 %v2475
    %3546 = vmatprep.subr.bf16.mxu0 %v2478
    %3547 = vmatpush1.bf16.msra.mxu0 %v2477
    %3548 = vmatprep.subr.bf16.mxu0 %v2480
    %3549 = vmatpush1.bf16.msra.mxu0 %v2479
    %3550 = vmatprep.subr.bf16.mxu0 %v2482
    %3551 = vmatpush1.bf16.msra.mxu0 %v2481
    %3552 = vmatprep.subr.bf16.mxu0 %v2484
    %3553 = vmatpush1.bf16.msra.mxu0 %v2483
    %3554 = vmatprep.mubr.bf16.mxu0 %v212
    %3555 = vmatmul.mubr.bf16.gmra.mrb[0].mxu0 %v211
    %v3556 = vpop.f32.mrb[0].mxu0
    %v3557 = vadd.f32 %v3516, %v3556
    %v3558 = vpop.f32.mrb[0].mxu0
    %v3559 = vadd.f32 %v3518, %v3558
    %v3560 = vpop.f32.mrb[0].mxu0
    %v3561 = vpop.f32.mrb[0].mxu0
    %3562 = vdwg.mxu0
    %3563 = vmatprep.subr.bf16.mxu0 %v2486
    %3564 = vmatpush1.bf16.msra.mxu0 %v2485
    %3565 = vmatprep.subr.bf16.mxu0 %v2488
    %3566 = vmatpush1.bf16.msra.mxu0 %v2487
    %3567 = vmatprep.subr.bf16.mxu0 %v2490
    %3568 = vmatpush1.bf16.msra.mxu0 %v2489
    %3569 = vmatprep.subr.bf16.mxu0 %v2492
    %3570 = vmatpush1.bf16.msra.mxu0 %v2491
    %3571 = vmatprep.subr.bf16.mxu0 %v2494
    %3572 = vmatpush1.bf16.msra.mxu0 %v2493
    %3573 = vmatprep.subr.bf16.mxu0 %v2496
    %3574 = vmatpush1.bf16.msra.mxu0 %v2495
    %3575 = vmatprep.subr.bf16.mxu0 %v2498
    %3576 = vmatpush1.bf16.msra.mxu0 %v2497
    %3577 = vmatprep.subr.bf16.mxu0 %v2500
    %3578 = vmatpush1.bf16.msra.mxu0 %v2499
    %3579 = vmatprep.subr.bf16.mxu0 %v2502
    %3580 = vmatpush1.bf16.msra.mxu0 %v2501
    %3581 = vmatprep.subr.bf16.mxu0 %v2504
    %3582 = vmatpush1.bf16.msra.mxu0 %v2503
    %3583 = vmatprep.subr.bf16.mxu0 %v2506
    %3584 = vmatpush1.bf16.msra.mxu0 %v2505
    %3585 = vmatprep.subr.bf16.mxu0 %v2508
    %3586 = vmatpush1.bf16.msra.mxu0 %v2507
    %3587 = vmatprep.subr.bf16.mxu0 %v2510
    %3588 = vmatpush1.bf16.msra.mxu0 %v2509
    %3589 = vmatprep.subr.bf16.mxu0 %v2512
    %3590 = vmatpush1.bf16.msra.mxu0 %v2511
    %3591 = vmatprep.subr.bf16.mxu0 %v2514
    %3592 = vmatpush1.bf16.msra.mxu0 %v2513
    %3593 = vmatprep.subr.bf16.mxu0 %v2516
    %3594 = vmatpush1.bf16.msra.mxu0 %v2515
    %3595 = vmatprep.mubr.bf16.mxu0 %v214
    %3596 = vmatmul.mubr.bf16.gmra.mrb[0].mxu0 %v213
    %v3597 = vpop.f32.mrb[0].mxu0
    %v3598 = vadd.f32 %v3557, %v3597
    %v3599 = vpop.f32.mrb[0].mxu0
    %v3600 = vadd.f32 %v3559, %v3599
    %v3601 = vpop.f32.mrb[0].mxu0
    %v3602 = vpop.f32.mrb[0].mxu0
    %3603 = vdwg.mxu0
    %3604 = vmatprep.subr.bf16.mxu0 %v2518
    %3605 = vmatpush1.bf16.msra.mxu0 %v2517
    %3606 = vmatprep.subr.bf16.mxu0 %v2520
    %3607 = vmatpush1.bf16.msra.mxu0 %v2519
    %3608 = vmatprep.subr.bf16.mxu0 %v2522
    %3609 = vmatpush1.bf16.msra.mxu0 %v2521
    %3610 = vmatprep.subr.bf16.mxu0 %v2524
    %3611 = vmatpush1.bf16.msra.mxu0 %v2523
    %3612 = vmatprep.subr.bf16.mxu0 %v2526
    %3613 = vmatpush1.bf16.msra.mxu0 %v2525
    %3614 = vmatprep.subr.bf16.mxu0 %v2528
    %3615 = vmatpush1.bf16.msra.mxu0 %v2527
    %3616 = vmatprep.subr.bf16.mxu0 %v2530
    %3617 = vmatpush1.bf16.msra.mxu0 %v2529
    %3618 = vmatprep.subr.bf16.mxu0 %v2532
    %3619 = vmatpush1.bf16.msra.mxu0 %v2531
    %3620 = vmatprep.subr.bf16.mxu0 %v2534
    %3621 = vmatpush1.bf16.msra.mxu0 %v2533
    %3622 = vmatprep.subr.bf16.mxu0 %v2536
    %3623 = vmatpush1.bf16.msra.mxu0 %v2535
    %3624 = vmatprep.subr.bf16.mxu0 %v2538
    %3625 = vmatpush1.bf16.msra.mxu0 %v2537
    %3626 = vmatprep.subr.bf16.mxu0 %v2540
    %3627 = vmatpush1.bf16.msra.mxu0 %v2539
    %3628 = vmatprep.subr.bf16.mxu0 %v2542
    %3629 = vmatpush1.bf16.msra.mxu0 %v2541
    %3630 = vmatprep.subr.bf16.mxu0 %v2544
    %3631 = vmatpush1.bf16.msra.mxu0 %v2543
    %3632 = vmatprep.subr.bf16.mxu0 %v2546
    %3633 = vmatpush1.bf16.msra.mxu0 %v2545
    %3634 = vmatprep.subr.bf16.mxu0 %v2548
    %3635 = vmatpush1.bf16.msra.mxu0 %v2547
    %3636 = vmatprep.mubr.bf16.mxu0 %v216
    %3637 = vmatmul.mubr.bf16.gmra.mrb[0].mxu0 %v215
    %v3638 = vpop.f32.mrb[0].mxu0
    %v3639 = vadd.f32 %v3598, %v3638
    %v3640 = vpop.f32.mrb[0].mxu0
    %v3641 = vadd.f32 %v3600, %v3640
    %v3642 = vpop.f32.mrb[0].mxu0
    %v3643 = vpop.f32.mrb[0].mxu0
    %3644 = vdwg.mxu0
    %3645 = vmatprep.subr.bf16.mxu0 %v2550
    %3646 = vmatpush1.bf16.msra.mxu0 %v2549
    %3647 = vmatprep.subr.bf16.mxu0 %v2552
    %3648 = vmatpush1.bf16.msra.mxu0 %v2551
    %3649 = vmatprep.subr.bf16.mxu0 %v2554
    %3650 = vmatpush1.bf16.msra.mxu0 %v2553
    %3651 = vmatprep.subr.bf16.mxu0 %v2556
    %3652 = vmatpush1.bf16.msra.mxu0 %v2555
    %3653 = vmatprep.subr.bf16.mxu0 %v2558
    %3654 = vmatpush1.bf16.msra.mxu0 %v2557
    %3655 = vmatprep.subr.bf16.mxu0 %v2560
    %3656 = vmatpush1.bf16.msra.mxu0 %v2559
    %3657 = vmatprep.subr.bf16.mxu0 %v2562
    %3658 = vmatpush1.bf16.msra.mxu0 %v2561
    %3659 = vmatprep.subr.bf16.mxu0 %v2564
    %3660 = vmatpush1.bf16.msra.mxu0 %v2563
    %3661 = vmatprep.subr.bf16.mxu0 %v2566
    %3662 = vmatpush1.bf16.msra.mxu0 %v2565
    %3663 = vmatprep.subr.bf16.mxu0 %v2568
    %3664 = vmatpush1.bf16.msra.mxu0 %v2567
    %3665 = vmatprep.subr.bf16.mxu0 %v2570
    %3666 = vmatpush1.bf16.msra.mxu0 %v2569
    %3667 = vmatprep.subr.bf16.mxu0 %v2572
    %3668 = vmatpush1.bf16.msra.mxu0 %v2571
    %3669 = vmatprep.subr.bf16.mxu0 %v2574
    %3670 = vmatpush1.bf16.msra.mxu0 %v2573
    %3671 = vmatprep.subr.bf16.mxu0 %v2576
    %3672 = vmatpush1.bf16.msra.mxu0 %v2575
    %3673 = vmatprep.subr.bf16.mxu0 %v2578
    %3674 = vmatpush1.bf16.msra.mxu0 %v2577
    %3675 = vmatprep.subr.bf16.mxu0 %v2580
    %3676 = vmatpush1.bf16.msra.mxu0 %v2579
    %3677 = vmatprep.mubr.bf16.mxu0 %v218
    %3678 = vmatmul.mubr.bf16.gmra.mrb[0].mxu0 %v217
    %v3679 = vpop.f32.mrb[0].mxu0
    %v3680 = vadd.f32 %v3639, %v3679
    %v3681 = vpop.f32.mrb[0].mxu0
    %v3682 = vadd.f32 %v3641, %v3681
    %v3683 = vpop.f32.mrb[0].mxu0
    %v3684 = vpop.f32.mrb[0].mxu0
    %3685 = vdwg.mxu0
    %3686 = vmatprep.subr.bf16.mxu0 %v2582
    %3687 = vmatpush1.bf16.msra.mxu0 %v2581
    %3688 = vmatprep.subr.bf16.mxu0 %v2584
    %3689 = vmatpush1.bf16.msra.mxu0 %v2583
    %3690 = vmatprep.subr.bf16.mxu0 %v2586
    %3691 = vmatpush1.bf16.msra.mxu0 %v2585
    %3692 = vmatprep.subr.bf16.mxu0 %v2588
    %3693 = vmatpush1.bf16.msra.mxu0 %v2587
    %3694 = vmatprep.subr.bf16.mxu0 %v2590
    %3695 = vmatpush1.bf16.msra.mxu0 %v2589
    %3696 = vmatprep.subr.bf16.mxu0 %v2592
    %3697 = vmatpush1.bf16.msra.mxu0 %v2591
    %3698 = vmatprep.subr.bf16.mxu0 %v2594
    %3699 = vmatpush1.bf16.msra.mxu0 %v2593
    %3700 = vmatprep.subr.bf16.mxu0 %v2596
    %3701 = vmatpush1.bf16.msra.mxu0 %v2595
    %3702 = vmatprep.subr.bf16.mxu0 %v2598
    %3703 = vmatpush1.bf16.msra.mxu0 %v2597
    %3704 = vmatprep.subr.bf16.mxu0 %v2600
    %3705 = vmatpush1.bf16.msra.mxu0 %v2599
    %3706 = vmatprep.subr.bf16.mxu0 %v2602
    %3707 = vmatpush1.bf16.msra.mxu0 %v2601
    %3708 = vmatprep.subr.bf16.mxu0 %v2604
    %3709 = vmatpush1.bf16.msra.mxu0 %v2603
    %3710 = vmatprep.subr.bf16.mxu0 %v2606
    %3711 = vmatpush1.bf16.msra.mxu0 %v2605
    %3712 = vmatprep.subr.bf16.mxu0 %v2608
    %3713 = vmatpush1.bf16.msra.mxu0 %v2607
    %3714 = vmatprep.subr.bf16.mxu0 %v2610
    %3715 = vmatpush1.bf16.msra.mxu0 %v2609
    %3716 = vmatprep.subr.bf16.mxu0 %v2612
    %3717 = vmatpush1.bf16.msra.mxu0 %v2611
    %3718 = vmatprep.mubr.bf16.mxu0 %v220
    %3719 = vmatmul.mubr.bf16.gmra.mrb[0].mxu0 %v219
    %v3720 = vpop.f32.mrb[0].mxu0
    %v3721 = vadd.f32 %v3680, %v3720
    %v3722 = vpop.f32.mrb[0].mxu0
    %v3723 = vadd.f32 %v3682, %v3722
    %v3724 = vpop.f32.mrb[0].mxu0
    %v3725 = vpop.f32.mrb[0].mxu0
    %3726 = vdwg.mxu0
    %3727 = vmatprep.subr.bf16.mxu0 %v2614
    %3728 = vmatpush1.bf16.msra.mxu0 %v2613
    %3729 = vmatprep.subr.bf16.mxu0 %v2616
    %3730 = vmatpush1.bf16.msra.mxu0 %v2615
    %3731 = vmatprep.subr.bf16.mxu0 %v2618
    %3732 = vmatpush1.bf16.msra.mxu0 %v2617
    %3733 = vmatprep.subr.bf16.mxu0 %v2620
    %3734 = vmatpush1.bf16.msra.mxu0 %v2619
    %3735 = vmatprep.subr.bf16.mxu0 %v2622
    %3736 = vmatpush1.bf16.msra.mxu0 %v2621
    %3737 = vmatprep.subr.bf16.mxu0 %v2624
    %3738 = vmatpush1.bf16.msra.mxu0 %v2623
    %3739 = vmatprep.subr.bf16.mxu0 %v2626
    %3740 = vmatpush1.bf16.msra.mxu0 %v2625
    %3741 = vmatprep.subr.bf16.mxu0 %v2628
    %3742 = vmatpush1.bf16.msra.mxu0 %v2627
    %3743 = vmatprep.subr.bf16.mxu0 %v2630
    %3744 = vmatpush1.bf16.msra.mxu0 %v2629
    %3745 = vmatprep.subr.bf16.mxu0 %v2632
    %3746 = vmatpush1.bf16.msra.mxu0 %v2631
    %3747 = vmatprep.subr.bf16.mxu0 %v2634
    %3748 = vmatpush1.bf16.msra.mxu0 %v2633
    %3749 = vmatprep.subr.bf16.mxu0 %v2636
    %3750 = vmatpush1.bf16.msra.mxu0 %v2635
    %3751 = vmatprep.subr.bf16.mxu0 %v2638
    %3752 = vmatpush1.bf16.msra.mxu0 %v2637
    %3753 = vmatprep.subr.bf16.mxu0 %v2640
    %3754 = vmatpush1.bf16.msra.mxu0 %v2639
    %3755 = vmatprep.subr.bf16.mxu0 %v2642
    %3756 = vmatpush1.bf16.msra.mxu0 %v2641
    %3757 = vmatprep.subr.bf16.mxu0 %v2644
    %3758 = vmatpush1.bf16.msra.mxu0 %v2643
    %3759 = vmatprep.mubr.bf16.mxu0 %v222
    %3760 = vmatmul.mubr.bf16.gmra.mrb[0].mxu0 %v221
    %v3761 = vpop.f32.mrb[0].mxu0
    %v3762 = vadd.f32 %v3721, %v3761
    %v3763 = vpop.f32.mrb[0].mxu0
    %v3764 = vadd.f32 %v3723, %v3763
    %v3765 = vpop.f32.mrb[0].mxu0
    %v3766 = vpop.f32.mrb[0].mxu0
    %3767 = vdwg.mxu0
    %3768 = vmatprep.subr.bf16.mxu0 %v2646
    %3769 = vmatpush1.bf16.msra.mxu0 %v2645
    %3770 = vmatprep.subr.bf16.mxu0 %v2648
    %3771 = vmatpush1.bf16.msra.mxu0 %v2647
    %3772 = vmatprep.subr.bf16.mxu0 %v2650
    %3773 = vmatpush1.bf16.msra.mxu0 %v2649
    %3774 = vmatprep.subr.bf16.mxu0 %v2652
    %3775 = vmatpush1.bf16.msra.mxu0 %v2651
    %3776 = vmatprep.subr.bf16.mxu0 %v2654
    %3777 = vmatpush1.bf16.msra.mxu0 %v2653
    %3778 = vmatprep.subr.bf16.mxu0 %v2656
    %3779 = vmatpush1.bf16.msra.mxu0 %v2655
    %3780 = vmatprep.subr.bf16.mxu0 %v2658
    %3781 = vmatpush1.bf16.msra.mxu0 %v2657
    %3782 = vmatprep.subr.bf16.mxu0 %v2660
    %3783 = vmatpush1.bf16.msra.mxu0 %v2659
    %3784 = vmatprep.subr.bf16.mxu0 %v2662
    %3785 = vmatpush1.bf16.msra.mxu0 %v2661
    %3786 = vmatprep.subr.bf16.mxu0 %v2664
    %3787 = vmatpush1.bf16.msra.mxu0 %v2663
    %3788 = vmatprep.subr.bf16.mxu0 %v2666
    %3789 = vmatpush1.bf16.msra.mxu0 %v2665
    %3790 = vmatprep.subr.bf16.mxu0 %v2668
    %3791 = vmatpush1.bf16.msra.mxu0 %v2667
    %3792 = vmatprep.subr.bf16.mxu0 %v2670
    %3793 = vmatpush1.bf16.msra.mxu0 %v2669
    %3794 = vmatprep.subr.bf16.mxu0 %v2672
    %3795 = vmatpush1.bf16.msra.mxu0 %v2671
    %3796 = vmatprep.subr.bf16.mxu0 %v2674
    %3797 = vmatpush1.bf16.msra.mxu0 %v2673
    %3798 = vmatprep.subr.bf16.mxu0 %v2676
    %3799 = vmatpush1.bf16.msra.mxu0 %v2675
    %3800 = vmatprep.mubr.bf16.mxu0 %v224
    %3801 = vmatmul.mubr.bf16.gmra.mrb[0].mxu0 %v223
    %v3802 = vpop.f32.mrb[0].mxu0
    %v3803 = vadd.f32 %v3762, %v3802
    %v3804 = vpop.f32.mrb[0].mxu0
    %v3805 = vadd.f32 %v3764, %v3804
    %v3806 = vpop.f32.mrb[0].mxu0
    %v3807 = vpop.f32.mrb[0].mxu0
    %3808 = vdwg.mxu0
    %3809 = vmatprep.subr.bf16.mxu0 %v2678
    %3810 = vmatpush1.bf16.msra.mxu0 %v2677
    %3811 = vmatprep.subr.bf16.mxu0 %v2680
    %3812 = vmatpush1.bf16.msra.mxu0 %v2679
    %3813 = vmatprep.subr.bf16.mxu0 %v2682
    %3814 = vmatpush1.bf16.msra.mxu0 %v2681
    %3815 = vmatprep.subr.bf16.mxu0 %v2684
    %3816 = vmatpush1.bf16.msra.mxu0 %v2683
    %3817 = vmatprep.subr.bf16.mxu0 %v2686
    %3818 = vmatpush1.bf16.msra.mxu0 %v2685
    %3819 = vmatprep.subr.bf16.mxu0 %v2688
    %3820 = vmatpush1.bf16.msra.mxu0 %v2687
    %3821 = vmatprep.subr.bf16.mxu0 %v2690
    %3822 = vmatpush1.bf16.msra.mxu0 %v2689
    %3823 = vmatprep.subr.bf16.mxu0 %v2692
    %3824 = vmatpush1.bf16.msra.mxu0 %v2691
    %3825 = vmatprep.subr.bf16.mxu0 %v2694
    %3826 = vmatpush1.bf16.msra.mxu0 %v2693
    %3827 = vmatprep.subr.bf16.mxu0 %v2696
    %3828 = vmatpush1.bf16.msra.mxu0 %v2695
    %3829 = vmatprep.subr.bf16.mxu0 %v2698
    %3830 = vmatpush1.bf16.msra.mxu0 %v2697
    %3831 = vmatprep.subr.bf16.mxu0 %v2700
    %3832 = vmatpush1.bf16.msra.mxu0 %v2699
    %3833 = vmatprep.subr.bf16.mxu0 %v2702
    %3834 = vmatpush1.bf16.msra.mxu0 %v2701
    %3835 = vmatprep.subr.bf16.mxu0 %v2704
    %3836 = vmatpush1.bf16.msra.mxu0 %v2703
    %3837 = vmatprep.subr.bf16.mxu0 %v2706
    %3838 = vmatpush1.bf16.msra.mxu0 %v2705
    %3839 = vmatprep.subr.bf16.mxu0 %v2708
    %3840 = vmatpush1.bf16.msra.mxu0 %v2707
    %3841 = vmatprep.mubr.bf16.mxu0 %v226
    %3842 = vmatmul.mubr.bf16.gmra.mrb[0].mxu0 %v225
    %v3843 = vpop.f32.mrb[0].mxu0
    %v3844 = vadd.f32 %v3803, %v3843
    %v3845 = vpop.f32.mrb[0].mxu0
    %v3846 = vadd.f32 %v3805, %v3845
    %v3847 = vpop.f32.mrb[0].mxu0
    %v3848 = vpop.f32.mrb[0].mxu0
    %3849 = vdwg.mxu0
    %3850 = vmatprep.subr.bf16.mxu0 %v2710
    %3851 = vmatpush1.bf16.msra.mxu0 %v2709
    %3852 = vmatprep.subr.bf16.mxu0 %v2712
    %3853 = vmatpush1.bf16.msra.mxu0 %v2711
    %3854 = vmatprep.subr.bf16.mxu0 %v2714
    %3855 = vmatpush1.bf16.msra.mxu0 %v2713
    %3856 = vmatprep.subr.bf16.mxu0 %v2716
    %3857 = vmatpush1.bf16.msra.mxu0 %v2715
    %3858 = vmatprep.subr.bf16.mxu0 %v2718
    %3859 = vmatpush1.bf16.msra.mxu0 %v2717
    %3860 = vmatprep.subr.bf16.mxu0 %v2720
    %3861 = vmatpush1.bf16.msra.mxu0 %v2719
    %3862 = vmatprep.subr.bf16.mxu0 %v2722
    %3863 = vmatpush1.bf16.msra.mxu0 %v2721
    %3864 = vmatprep.subr.bf16.mxu0 %v2724
    %3865 = vmatpush1.bf16.msra.mxu0 %v2723
    %3866 = vmatprep.subr.bf16.mxu0 %v2726
    %3867 = vmatpush1.bf16.msra.mxu0 %v2725
    %3868 = vmatprep.subr.bf16.mxu0 %v2728
    %3869 = vmatpush1.bf16.msra.mxu0 %v2727
    %3870 = vmatprep.subr.bf16.mxu0 %v2730
    %3871 = vmatpush1.bf16.msra.mxu0 %v2729
    %3872 = vmatprep.subr.bf16.mxu0 %v2732
    %3873 = vmatpush1.bf16.msra.mxu0 %v2731
    %3874 = vmatprep.subr.bf16.mxu0 %v2734
    %3875 = vmatpush1.bf16.msra.mxu0 %v2733
    %3876 = vmatprep.subr.bf16.mxu0 %v2736
    %3877 = vmatpush1.bf16.msra.mxu0 %v2735
    %3878 = vmatprep.subr.bf16.mxu0 %v2738
    %3879 = vmatpush1.bf16.msra.mxu0 %v2737
    %3880 = vmatprep.subr.bf16.mxu0 %v2740
    %3881 = vmatpush1.bf16.msra.mxu0 %v2739
    %3882 = vmatprep.mubr.bf16.mxu0 %v228
    %3883 = vmatmul.mubr.bf16.gmra.mrb[0].mxu0 %v227
    %v3884 = vpop.f32.mrb[0].mxu0
    %v3885 = vadd.f32 %v3844, %v3884
    %v3886 = vpop.f32.mrb[0].mxu0
    %v3887 = vadd.f32 %v3846, %v3886
    %v3888 = vpop.f32.mrb[0].mxu0
    %v3889 = vpop.f32.mrb[0].mxu0
    %3890 = vdwg.mxu0
    %3891 = vmatprep.subr.bf16.mxu0 %v2742
    %3892 = vmatpush1.bf16.msra.mxu0 %v2741
    %3893 = vmatprep.subr.bf16.mxu0 %v2744
    %3894 = vmatpush1.bf16.msra.mxu0 %v2743
    %3895 = vmatprep.subr.bf16.mxu0 %v2746
    %3896 = vmatpush1.bf16.msra.mxu0 %v2745
    %3897 = vmatprep.subr.bf16.mxu0 %v2748
    %3898 = vmatpush1.bf16.msra.mxu0 %v2747
    %3899 = vmatprep.subr.bf16.mxu0 %v2750
    %3900 = vmatpush1.bf16.msra.mxu0 %v2749
    %3901 = vmatprep.subr.bf16.mxu0 %v2752
    %3902 = vmatpush1.bf16.msra.mxu0 %v2751
    %3903 = vmatprep.subr.bf16.mxu0 %v2754
    %3904 = vmatpush1.bf16.msra.mxu0 %v2753
    %3905 = vmatprep.subr.bf16.mxu0 %v2756
    %3906 = vmatpush1.bf16.msra.mxu0 %v2755
    %3907 = vmatprep.subr.bf16.mxu0 %v2758
    %3908 = vmatpush1.bf16.msra.mxu0 %v2757
    %3909 = vmatprep.subr.bf16.mxu0 %v2760
    %3910 = vmatpush1.bf16.msra.mxu0 %v2759
    %3911 = vmatprep.subr.bf16.mxu0 %v2762
    %3912 = vmatpush1.bf16.msra.mxu0 %v2761
    %3913 = vmatprep.subr.bf16.mxu0 %v2764
    %3914 = vmatpush1.bf16.msra.mxu0 %v2763
    %3915 = vmatprep.subr.bf16.mxu0 %v2766
    %3916 = vmatpush1.bf16.msra.mxu0 %v2765
    %3917 = vmatprep.subr.bf16.mxu0 %v2768
    %3918 = vmatpush1.bf16.msra.mxu0 %v2767
    %3919 = vmatprep.subr.bf16.mxu0 %v2770
    %3920 = vmatpush1.bf16.msra.mxu0 %v2769
    %3921 = vmatprep.subr.bf16.mxu0 %v2772
    %3922 = vmatpush1.bf16.msra.mxu0 %v2771
    %3923 = vmatprep.mubr.bf16.mxu0 %v230
    %3924 = vmatmul.mubr.bf16.gmra.mrb[0].mxu0 %v229
    %v3925 = vpop.f32.mrb[0].mxu0
    %v3926 = vadd.f32 %v3885, %v3925
    %v3927 = vpop.f32.mrb[0].mxu0
    %v3928 = vadd.f32 %v3887, %v3927
    %v3929 = vpop.f32.mrb[0].mxu0
    %v3930 = vpop.f32.mrb[0].mxu0
    %3931 = vdwg.mxu0
    %3932 = vmatprep.subr.bf16.mxu0 %v2774
    %3933 = vmatpush1.bf16.msra.mxu0 %v2773
    %3934 = vmatprep.subr.bf16.mxu0 %v2776
    %3935 = vmatpush1.bf16.msra.mxu0 %v2775
    %3936 = vmatprep.subr.bf16.mxu0 %v2778
    %3937 = vmatpush1.bf16.msra.mxu0 %v2777
    %3938 = vmatprep.subr.bf16.mxu0 %v2780
    %3939 = vmatpush1.bf16.msra.mxu0 %v2779
    %3940 = vmatprep.subr.bf16.mxu0 %v2782
    %3941 = vmatpush1.bf16.msra.mxu0 %v2781
    %3942 = vmatprep.subr.bf16.mxu0 %v2784
    %3943 = vmatpush1.bf16.msra.mxu0 %v2783
    %3944 = vmatprep.subr.bf16.mxu0 %v2786
    %3945 = vmatpush1.bf16.msra.mxu0 %v2785
    %3946 = vmatprep.subr.bf16.mxu0 %v2788
    %3947 = vmatpush1.bf16.msra.mxu0 %v2787
    %3948 = vmatprep.subr.bf16.mxu0 %v2790
    %3949 = vmatpush1.bf16.msra.mxu0 %v2789
    %3950 = vmatprep.subr.bf16.mxu0 %v2792
    %3951 = vmatpush1.bf16.msra.mxu0 %v2791
    %3952 = vmatprep.subr.bf16.mxu0 %v2794
    %3953 = vmatpush1.bf16.msra.mxu0 %v2793
    %3954 = vmatprep.subr.bf16.mxu0 %v2796
    %3955 = vmatpush1.bf16.msra.mxu0 %v2795
    %3956 = vmatprep.subr.bf16.mxu0 %v2798
    %3957 = vmatpush1.bf16.msra.mxu0 %v2797
    %3958 = vmatprep.subr.bf16.mxu0 %v2800
    %3959 = vmatpush1.bf16.msra.mxu0 %v2799
    %3960 = vmatprep.subr.bf16.mxu0 %v2802
    %3961 = vmatpush1.bf16.msra.mxu0 %v2801
    %3962 = vmatprep.subr.bf16.mxu0 %v2804
    %3963 = vmatpush1.bf16.msra.mxu0 %v2803
    %3964 = vmatprep.mubr.bf16.mxu0 %v232
    %3965 = vmatmul.mubr.bf16.gmra.mrb[0].mxu0 %v231
    %v3966 = vpop.f32.mrb[0].mxu0
    %v3967 = vadd.f32 %v3926, %v3966
    %v3968 = vpop.f32.mrb[0].mxu0
    %v3969 = vadd.f32 %v3928, %v3968
    %v3970 = vpop.f32.mrb[0].mxu0
    %v3971 = vpop.f32.mrb[0].mxu0
    %3972 = vdwg.mxu0
    %v3975 = vcombine.low %v3967, %v3969
    %v3977 = vunpack.c.l.s4 1983009808
    %v3978 = vunpack.c.0.s8 %v3977
    %v3979 = vlaneseq
    %v3980 = vshrl.u32 %v3979, 7
    %v3981 = vsub.s32 %v3978, %v3980
    %v3982 = vrot.slane %v3975, %v3981
    %vm3984 = vcmask 1041408
    %vm3985 = vcmask 584706
    %vm3986 = vmor %vm3985, %vm3984
    %3987 = vst.msk [vmem:[#allocation2] sm:$0xf] %vm3986, %v3982
    %v3988 = vlaneseq
    %v3989 = vand.u32 %v3988, 127
    %v3990 = vadd.s32 %v3989, 128
    %v3991 = vsel %vm3984, %v3967, -inf
    %vm3992 = vcmask 582656
    %v3993 = vsel %vm3992, %v3969, -inf
    %v3994 = vmax.f32 %v3991, %v3993
    %3995 = vmax.xlane.f32.xlu0 %v3994
    %v3996 = vpop.xlane.xlu0 %3995
    %vm3997 = vcmp.eq.f32.partialorder %v3967, %v3996
    %vm3998 = vcmp.eq.f32.partialorder %v3969, %v3996
    %v3999 = vsel %vm3997, %v3989, 200
    %v4000 = vsel %vm3998, %v3990, 200
    %v4001 = vsel %vm3984, %v3999, 2147483647
    %v4002 = vsel %vm3992, %v4000, 2147483647
    %vm4003 = vcmp.lt.s32.totalorder %v4001, %v4002
    %v4004 = vsel %vm4003, %v4001, %v4002
    %v4005 = vand.u32 %v4004, 65535
    %v4006 = vshra.s32 %v4004, 16
    %v4007 = vcvt.s32.f32 %v4005
    %v4008 = vcvt.s32.f32 %v4006
    %4009 = vmin.xlane.f32.xlu0 %v4008
    %v4010 = vpop.xlane.xlu0 %4009
    %vm4011 = vcmp.eq.f32.partialorder %v4008, %v4010
    %v4012 = vsel %vm4011, %v4007, inf
    %4013 = vmin.xlane.f32.xlu0 %v4012
    %v4014 = vpop.xlane.xlu0 %4013
    %v4015 = vcvt.f32.s32 %v4014
    %v4016 = vcvt.f32.s32 %v4010
    %v4017 = vshll.u32 %v4016, 16
    %v4018 = vadd.s32 %v4017, %v4015
    %vm4019 = vcmask 1024
    %4020 = vst.msk [vmem:[%s4] sm:$0x3] %vm4019, %v4018
    // Predicated region
    $region14: #{last_layer_forward.1} parent=1 // pred_check
      _
    $region15: #{last_layer_forward.1} parent=1 // pred_check_branch
      %4022 = sbr.rel (0) target = $region17
    $region16: #{last_layer_forward.1} parent=1 // pred_region
      %s4024 = ssub.s32 64, 64
      %4025 = vsyncadd [#allocation3], %s4024
      %s4027 = sshll.u32 [#allocation2], 4
      %s4028 = int_to_ptr.vmem [resolvable:$true] %s4027
      %4030 = dma.vmem_to_hbm [thread:$0]  %s4028, 64, %s3, [#allocation3]
    $region17: #{last_layer_forward.1} parent=1 // pred_fallthru
      _
    // Predicated region
    $region18: #{last_layer_forward.1} parent=1 // pred_check
      _
    $region19: #{last_layer_forward.1} parent=1 // pred_check_branch
      %4032 = sbr.rel (0) target = $region21
    $region20: #{last_layer_forward.1} parent=1 // pred_region
      _
    $region21: #{last_layer_forward.1} parent=1 // pred_fallthru
      _
    // Predicated region
    $region22: #{last_layer_forward.1} parent=1 // pred_check
      _
    $region23: #{last_layer_forward.1} parent=1 // pred_check_branch
      %4034 = sbr.rel (0) target = $region25
    $region24: #{last_layer_forward.1} parent=1 // pred_region
      %4035 = dma.done [#allocation3], 64
    $region25: #{last_layer_forward.1} parent=1 // pred_fallthru
      _
    // Predicated region
    $region26: #{last_layer_forward.1} parent=1 // pred_check
      _
    $region27: #{last_layer_forward.1} parent=1 // pred_check_branch
      %4037 = sbr.rel (0) target = $region29
    $region28: #{last_layer_forward.1} parent=1 // pred_region
      _
    $region29: #{last_layer_forward.1} parent=1 // pred_fallthru
      _
    %4038 = vsyncpa [#allocation3], 1

</llo_original>
